<compile_context>
chip_gen: v7x
topology: tpu7x:2x2x1
jax: 0.10.0
libtpu: 0.0.40
codegen_flags: <defaults>
</compile_context>

<pallas_src>
import functools

import numpy as np
import jax
import jax.numpy as jnp
from jax import lax
from jax.experimental import pallas as pl
from jax.experimental.pallas import tpu as pltpu

_BN_EPS = 1e-5


# ------------------------------ Pallas kernel -------------------------------

def _bottleneck_kernel(x_ref, w1_ref, b1_ref, w2_ref, b2_ref, w3_ref, b3_ref,
                       mask_ref, o_ref, *, w, compute_dtype):
    """Fused bottleneck for one image, channels-first (C, H*W) layout."""
    hw = x_ref.shape[-1]
    cmid = w1_ref.shape[0]

    x = x_ref[...]                                           # (Cin, HW)

    # conv1 (1x1) + bn1 (scale folded into w1) + relu
    y1 = jnp.dot(w1_ref[...], x.astype(compute_dtype),
                 preferred_element_type=jnp.float32)         # (Cmid, HW)
    y1 = jnp.maximum(y1 + b1_ref[...], 0.0).astype(compute_dtype)

    # conv2 (3x3, pad=1) + bn2 + relu.
    # Tap (dy, dx): roll the flattened spatial (lane) axis by dy*w + dx,
    # zero the invalid (border / row-wrap) lanes with a precomputed mask,
    # and accumulate an MXU matmul with that tap's (Cmid, Cmid) weights.
    acc = jnp.zeros((cmid, hw), jnp.float32)
    k = 0
    for dy in (-1, 0, 1):
        for dx in (-1, 0, 1):
            off = dy * w + dx
            if off == 0:
                tap = y1
            else:
                tap = pltpu.roll(y1, shift=(-off) % hw, axis=1)
                tap = tap * mask_ref[k].astype(tap.dtype)
            acc = acc + jnp.dot(w2_ref[k], tap,
                                preferred_element_type=jnp.float32)
            k += 1
    y2 = jnp.maximum(acc + b2_ref[...], 0.0).astype(compute_dtype)

    # conv3 (1x1) + bn3 + identity residual + relu
    y3 = jnp.dot(w3_ref[...], y2, preferred_element_type=jnp.float32)
    y3 = jnp.maximum(y3 + b3_ref[...] + x.astype(jnp.float32), 0.0)
    o_ref[...] = y3.astype(o_ref.dtype)                      # lane-dense store


# ------------------------------ Block wrapper --------------------------------

def _conv3x3_border_masks(h, w):
    """(9, 1, h*w) {0,1} masks: flattened positions whose (dy, dx) neighbour is
    inside the image (everything else reads the zero padding)."""
    ii, jj = np.meshgrid(np.arange(h), np.arange(w), indexing="ij")
    masks = []
    for dy in (-1, 0, 1):
        for dx in (-1, 0, 1):
            valid = ((ii + dy >= 0) & (ii + dy < h) &
                     (jj + dx >= 0) & (jj + dx < w))
            masks.append(valid.reshape(1, h * w))
    return jnp.asarray(np.stack(masks), dtype=jnp.float32)


def bottleneck_forward(x_nchw, params, stride=1):
    """Pallas implementation. downsample=None -> identity residual, stride=1."""
    assert stride == 1, "identity residual requires stride=1 when downsample=None"
    n, cin, h, w = x_nchw.shape
    cmid = params["w1"].shape[0]
    cout = params["w3"].shape[0]
    assert cin == cout, "identity add requires in_channel == block_channel * 4"
    hw = h * w
    compute_dtype = params["w1"].dtype

    x = x_nchw.reshape(n, cin, hw)        # channels-first, flattened spatial
    masks = _conv3x3_border_masks(h, w)

    kernel = functools.partial(_bottleneck_kernel, w=w,
                               compute_dtype=compute_dtype)

    flops = 2 * n * hw * (cin * cmid + 9 * cmid * cmid + cmid * cout)
    bytes_accessed = int(
        x.size * x_nchw.dtype.itemsize
        + n * cout * hw * x_nchw.dtype.itemsize
        + sum(params[k].size * params[k].dtype.itemsize
              for k in ("w1", "b1", "w2", "b2", "w3", "b3"))
        + masks.size * masks.dtype.itemsize)

    out = pl.pallas_call(
        kernel,
        out_shape=jax.ShapeDtypeStruct((n, cout, hw), x_nchw.dtype),
        grid_spec=pltpu.PrefetchScalarGridSpec(
            num_scalar_prefetch=0,
            grid=(n,),
            in_specs=[
                pl.BlockSpec((None, cin, hw), lambda i: (i, 0, 0)),   # x (lane-dense)
                pl.BlockSpec((cmid, cin), lambda i: (0, 0)),          # w1 (BN-scaled)
                pl.BlockSpec((cmid, 1), lambda i: (0, 0)),            # b1
                pl.BlockSpec((9, cmid, cmid), lambda i: (0, 0, 0)),   # w2, 9 taps (O, I)
                pl.BlockSpec((cmid, 1), lambda i: (0, 0)),            # b2
                pl.BlockSpec((cout, cmid), lambda i: (0, 0)),         # w3 (BN-scaled)
                pl.BlockSpec((cout, 1), lambda i: (0, 0)),            # b3
                pl.BlockSpec((9, 1, hw), lambda i: (0, 0, 0)),        # border masks
            ],
            out_specs=pl.BlockSpec((None, cout, hw), lambda i: (i, 0, 0)),
        ),
        compiler_params=pltpu.CompilerParams(
            dimension_semantics=("parallel",)),
        cost_estimate=pl.CostEstimate(flops=flops, transcendentals=0,
                                      bytes_accessed=bytes_accessed),
    )(x, params["w1"], params["b1"], params["w2"], params["b2"],
      params["w3"], params["b3"], masks)

    return out.reshape(n, cout, h, w)      # already NCHW


# --------------------------------- Params -------------------------------------

def init_params(key, in_channel, block_channel, expansion=4,
                compute_dtype=jnp.float32):
    """Deterministic params.  Inference BN is folded: gamma/sqrt(var+eps) is
    multiplied into the conv weights (per output channel); only the bias
    beta - mean*scale remains as a kernel input.  Set compute_dtype=bfloat16
    to feed the MXU at full rate at real ResNet channel counts (loosen the
    check tolerance accordingly)."""
    cmid = block_channel
    cout = block_channel * expansion
    ks = jax.random.split(key, 3)
    # PyTorch-convention conv weights (Cout, Cin, kh, kw), bias=False.
    w1_t = 0.1 * jax.random.normal(ks[0], (cmid, in_channel, 1, 1), jnp.float32)
    w2_t = 0.1 * jax.random.normal(ks[1], (cmid, cmid, 3, 3), jnp.float32)
    w3_t = 0.1 * jax.random.normal(ks[2], (cout, cmid, 1, 1), jnp.float32)

    def bn_stats(c, salt):
        i = jnp.arange(c, dtype=jnp.float32)
        gamma = 1.0 + 0.01 * i * salt
        beta = 0.02 * i - 0.01 * salt
        mean = 0.03 * jnp.sin(i + salt)
        var = 1.0 + 0.05 * (i % 4)
        return gamma, beta, mean, var

    bn1, bn2, bn3 = bn_stats(cmid, 1.0), bn_stats(cmid, 2.0), bn_stats(cout, 3.0)

    def fold(gamma, beta, mean, var):
        scale = gamma / jnp.sqrt(var + _BN_EPS)
        return scale, beta - mean * scale

    s1, b1 = fold(*bn1)
    s2, b2 = fold(*bn2)
    s3, b3 = fold(*bn3)

    # Kernel-ready channels-first weights with BN scale folded into Cout.
    w2_taps = jnp.stack([w2_t[:, :, dy, dx]
                         for dy in range(3) for dx in range(3)])   # (9, O, I)
    params = {
        "w1": (w1_t[:, :, 0, 0] * s1[:, None]).astype(compute_dtype),   # (Cmid, Cin)
        "w2": (w2_taps * s2[None, :, None]).astype(compute_dtype),      # (9, Cmid, Cmid)
        "w3": (w3_t[:, :, 0, 0] * s3[:, None]).astype(compute_dtype),   # (Cout, Cmid)
        "b1": b1.reshape(-1, 1), "b2": b2.reshape(-1, 1), "b3": b3.reshape(-1, 1),
        # Raw HWIO weights + BN stats for the independent pure-JAX reference.
        "w1_hwio": jnp.transpose(w1_t, (2, 3, 1, 0)),
        "w2_hwio": jnp.transpose(w2_t, (2, 3, 1, 0)),
        "w3_hwio": jnp.transpose(w3_t, (2, 3, 1, 0)),
        "bn1": bn1, "bn2": bn2, "bn3": bn3,
    }
    return params


# ---------------------------- Pure-JAX reference ------------------------------

def reference_forward(x_nchw, params):
    x = jnp.transpose(x_nchw, (0, 2, 3, 1))  # NHWC
    dn = lax.conv_dimension_numbers(x.shape, params["w1_hwio"].shape,
                                    ("NHWC", "HWIO", "NHWC"))

    def conv(inp, w_hwio, pad):
        return lax.conv_general_dilated(inp, w_hwio, (1, 1), pad,
                                        dimension_numbers=dn,
                                        precision=lax.Precision.HIGHEST)

    def bn(y, stats):
        gamma, beta, mean, var = stats
        return (y - mean) / jnp.sqrt(var + _BN_EPS) * gamma + beta

    y = jnp.maximum(bn(conv(x, params["w1_hwio"], "VALID"), params["bn1"]), 0.0)
    y = jnp.maximum(bn(conv(y, params["w2_hwio"], "SAME"), params["bn2"]), 0.0)
    y = bn(conv(y, params["w3_hwio"], "VALID"), params["bn3"])
    y = jnp.maximum(y + x, 0.0)
    return jnp.transpose(y, (0, 3, 1, 2))


# ----------------------------------- main -------------------------------------

if __name__ == "__main__":
    # bottleneck(in_channel=16, block_channel=4) => out channels 16, identity skip
    in_channel, block_channel = 16, 4
    batch, spatial = 2, 16

    key = jax.random.PRNGKey(0)
    kx, kp = jax.random.split(key)
    x = jax.random.normal(kx, (batch, in_channel, spatial, spatial), jnp.float32)
    params = init_params(kp, in_channel, block_channel)

    fwd = jax.jit(bottleneck_forward)
    out = jax.block_until_ready(fwd(x, params))
    ref = jax.block_until_ready(reference_forward(x, params))

    assert out.shape == (batch, in_channel, spatial, spatial)
    assert jnp.allclose(out, ref, atol=1e-4, rtol=1e-4), "mismatch vs JAX reference"
    print("KERNEL_OK")
</pallas_src>

<mosaic_0001>
module attributes {stable_mosaic.version = 11 : i64} {
  func.func @_bottleneck_kernel(%arg0: i32, %arg1: memref<1x16x256xf32, #tpu.memory_space<vmem>>, %arg2: memref<4x16xf32, #tpu.memory_space<vmem>>, %arg3: memref<4x1xf32, #tpu.memory_space<vmem>>, %arg4: memref<9x4x4xf32, #tpu.memory_space<vmem>>, %arg5: memref<4x1xf32, #tpu.memory_space<vmem>>, %arg6: memref<16x4xf32, #tpu.memory_space<vmem>>, %arg7: memref<16x1xf32, #tpu.memory_space<vmem>>, %arg8: memref<9x1x256xf32, #tpu.memory_space<vmem>>, %arg9: memref<1x16x256xf32, #tpu.memory_space<vmem>>) attributes {dimension_semantics = [#tpu.dimension_semantics<parallel>], iteration_bounds = array<i64: 2>, scalar_prefetch = 0 : i64, scratch_operands = 0 : i64, tpu.core_type = #tpu.core_type<tc>, window_params = [{transform_indices = @transform_0, window_bounds = array<i64: 1, 16, 256>}, {pipeline_mode = #tpu.pipeline_mode<synchronous>, transform_indices = @transform_1, window_bounds = array<i64: 4, 16>}, {pipeline_mode = #tpu.pipeline_mode<synchronous>, transform_indices = @transform_2, window_bounds = array<i64: 4, 1>}, {pipeline_mode = #tpu.pipeline_mode<synchronous>, transform_indices = @transform_3, window_bounds = array<i64: 9, 4, 4>}, {pipeline_mode = #tpu.pipeline_mode<synchronous>, transform_indices = @transform_4, window_bounds = array<i64: 4, 1>}, {pipeline_mode = #tpu.pipeline_mode<synchronous>, transform_indices = @transform_5, window_bounds = array<i64: 16, 4>}, {pipeline_mode = #tpu.pipeline_mode<synchronous>, transform_indices = @transform_6, window_bounds = array<i64: 16, 1>}, {pipeline_mode = #tpu.pipeline_mode<synchronous>, transform_indices = @transform_7, window_bounds = array<i64: 9, 1, 256>}, {transform_indices = @transform_8, window_bounds = array<i64: 1, 16, 256>}]} {
    %c0 = arith.constant 0 : index
    %c0_0 = arith.constant 0 : index
    %c0_1 = arith.constant 0 : index
    %0 = vector.load %arg1[%c0, %c0_0, %c0_1] : memref<1x16x256xf32, #tpu.memory_space<vmem>>, vector<1x16x256xf32>
    %1 = vector.shape_cast %0 : vector<1x16x256xf32> to vector<16x256xf32>
    %c0_2 = arith.constant 0 : index
    %c0_3 = arith.constant 0 : index
    %2 = vector.load %arg2[%c0_2, %c0_3] : memref<4x16xf32, #tpu.memory_space<vmem>>, vector<4x16xf32>
    %cst = arith.constant dense<0.000000e+00> : vector<4x256xf32>
    %3 = tpu.matmul %2, %1, %cst {dimension_numbers = #tpu.dot_dimension_numbers<[1], [0], [0], [1], [0, 0, 1, 1], [], []>} : vector<4x16xf32>, vector<16x256xf32>, vector<4x256xf32> -> vector<4x256xf32>
    %c0_4 = arith.constant 0 : index
    %c0_5 = arith.constant 0 : index
    %4 = vector.load %arg3[%c0_4, %c0_5] : memref<4x1xf32, #tpu.memory_space<vmem>>, vector<4x1xf32>
    %5 = vector.broadcast %4 : vector<4x1xf32> to vector<4x256xf32>
    %6 = arith.addf %3, %5 : vector<4x256xf32>
    %cst_6 = arith.constant 0.000000e+00 : f32
    %7 = vector.broadcast %cst_6 : f32 to vector<4x256xf32>
    %8 = arith.maximumf %6, %7 : vector<4x256xf32>
    %cst_7 = arith.constant 0.000000e+00 : f32
    %9 = vector.broadcast %cst_7 : f32 to vector<4x256xf32>
    %c17_i32 = arith.constant 17 : i32
    %10 = tpu.dynamic_rotate %8 by %c17_i32 dim 1 : vector<4x256xf32>, i32 -> vector<4x256xf32>
    %c0_8 = arith.constant 0 : index
    %c0_9 = arith.constant 0 : index
    %c0_10 = arith.constant 0 : index
    %11 = vector.load %arg8[%c0_8, %c0_9, %c0_10] : memref<9x1x256xf32, #tpu.memory_space<vmem>>, vector<1x1x256xf32>
    %12 = vector.shape_cast %11 : vector<1x1x256xf32> to vector<1x256xf32>
    %13 = vector.broadcast %12 : vector<1x256xf32> to vector<4x256xf32>
    %14 = arith.mulf %10, %13 : vector<4x256xf32>
    %c0_11 = arith.constant 0 : index
    %c0_12 = arith.constant 0 : index
    %c0_13 = arith.constant 0 : index
    %15 = vector.load %arg4[%c0_11, %c0_12, %c0_13] : memref<9x4x4xf32, #tpu.memory_space<vmem>>, vector<1x4x4xf32>
    %16 = vector.shape_cast %15 : vector<1x4x4xf32> to vector<4x4xf32>
    %cst_14 = arith.constant dense<0.000000e+00> : vector<4x256xf32>
    %17 = tpu.matmul %16, %14, %cst_14 {dimension_numbers = #tpu.dot_dimension_numbers<[1], [0], [0], [1], [0, 0, 1, 1], [], []>} : vector<4x4xf32>, vector<4x256xf32>, vector<4x256xf32> -> vector<4x256xf32>
    %18 = arith.addf %9, %17 : vector<4x256xf32>
    %c16_i32 = arith.constant 16 : i32
    %19 = tpu.dynamic_rotate %8 by %c16_i32 dim 1 : vector<4x256xf32>, i32 -> vector<4x256xf32>
    %c1 = arith.constant 1 : index
    %c0_15 = arith.constant 0 : index
    %c0_16 = arith.constant 0 : index
    %20 = vector.load %arg8[%c1, %c0_15, %c0_16] : memref<9x1x256xf32, #tpu.memory_space<vmem>>, vector<1x1x256xf32>
    %21 = vector.shape_cast %20 : vector<1x1x256xf32> to vector<1x256xf32>
    %22 = vector.broadcast %21 : vector<1x256xf32> to vector<4x256xf32>
    %23 = arith.mulf %19, %22 : vector<4x256xf32>
    %c1_17 = arith.constant 1 : index
    %c0_18 = arith.constant 0 : index
    %c0_19 = arith.constant 0 : index
    %24 = vector.load %arg4[%c1_17, %c0_18, %c0_19] : memref<9x4x4xf32, #tpu.memory_space<vmem>>, vector<1x4x4xf32>
    %25 = vector.shape_cast %24 : vector<1x4x4xf32> to vector<4x4xf32>
    %cst_20 = arith.constant dense<0.000000e+00> : vector<4x256xf32>
    %26 = tpu.matmul %25, %23, %cst_20 {dimension_numbers = #tpu.dot_dimension_numbers<[1], [0], [0], [1], [0, 0, 1, 1], [], []>} : vector<4x4xf32>, vector<4x256xf32>, vector<4x256xf32> -> vector<4x256xf32>
    %27 = arith.addf %18, %26 : vector<4x256xf32>
    %c15_i32 = arith.constant 15 : i32
    %28 = tpu.dynamic_rotate %8 by %c15_i32 dim 1 : vector<4x256xf32>, i32 -> vector<4x256xf32>
    %c2 = arith.constant 2 : index
    %c0_21 = arith.constant 0 : index
    %c0_22 = arith.constant 0 : index
    %29 = vector.load %arg8[%c2, %c0_21, %c0_22] : memref<9x1x256xf32, #tpu.memory_space<vmem>>, vector<1x1x256xf32>
    %30 = vector.shape_cast %29 : vector<1x1x256xf32> to vector<1x256xf32>
    %31 = vector.broadcast %30 : vector<1x256xf32> to vector<4x256xf32>
    %32 = arith.mulf %28, %31 : vector<4x256xf32>
    %c2_23 = arith.constant 2 : index
    %c0_24 = arith.constant 0 : index
    %c0_25 = arith.constant 0 : index
    %33 = vector.load %arg4[%c2_23, %c0_24, %c0_25] : memref<9x4x4xf32, #tpu.memory_space<vmem>>, vector<1x4x4xf32>
    %34 = vector.shape_cast %33 : vector<1x4x4xf32> to vector<4x4xf32>
    %cst_26 = arith.constant dense<0.000000e+00> : vector<4x256xf32>
    %35 = tpu.matmul %34, %32, %cst_26 {dimension_numbers = #tpu.dot_dimension_numbers<[1], [0], [0], [1], [0, 0, 1, 1], [], []>} : vector<4x4xf32>, vector<4x256xf32>, vector<4x256xf32> -> vector<4x256xf32>
    %36 = arith.addf %27, %35 : vector<4x256xf32>
    %c1_i32 = arith.constant 1 : i32
    %37 = tpu.dynamic_rotate %8 by %c1_i32 dim 1 : vector<4x256xf32>, i32 -> vector<4x256xf32>
    %c3 = arith.constant 3 : index
    %c0_27 = arith.constant 0 : index
    %c0_28 = arith.constant 0 : index
    %38 = vector.load %arg8[%c3, %c0_27, %c0_28] : memref<9x1x256xf32, #tpu.memory_space<vmem>>, vector<1x1x256xf32>
    %39 = vector.shape_cast %38 : vector<1x1x256xf32> to vector<1x256xf32>
    %40 = vector.broadcast %39 : vector<1x256xf32> to vector<4x256xf32>
    %41 = arith.mulf %37, %40 : vector<4x256xf32>
    %c3_29 = arith.constant 3 : index
    %c0_30 = arith.constant 0 : index
    %c0_31 = arith.constant 0 : index
    %42 = vector.load %arg4[%c3_29, %c0_30, %c0_31] : memref<9x4x4xf32, #tpu.memory_space<vmem>>, vector<1x4x4xf32>
    %43 = vector.shape_cast %42 : vector<1x4x4xf32> to vector<4x4xf32>
    %cst_32 = arith.constant dense<0.000000e+00> : vector<4x256xf32>
    %44 = tpu.matmul %43, %41, %cst_32 {dimension_numbers = #tpu.dot_dimension_numbers<[1], [0], [0], [1], [0, 0, 1, 1], [], []>} : vector<4x4xf32>, vector<4x256xf32>, vector<4x256xf32> -> vector<4x256xf32>
    %45 = arith.addf %36, %44 : vector<4x256xf32>
    %c4 = arith.constant 4 : index
    %c0_33 = arith.constant 0 : index
    %c0_34 = arith.constant 0 : index
    %46 = vector.load %arg4[%c4, %c0_33, %c0_34] : memref<9x4x4xf32, #tpu.memory_space<vmem>>, vector<1x4x4xf32>
    %47 = vector.shape_cast %46 : vector<1x4x4xf32> to vector<4x4xf32>
    %cst_35 = arith.constant dense<0.000000e+00> : vector<4x256xf32>
    %48 = tpu.matmul %47, %8, %cst_35 {dimension_numbers = #tpu.dot_dimension_numbers<[1], [0], [0], [1], [0, 0, 1, 1], [], []>} : vector<4x4xf32>, vector<4x256xf32>, vector<4x256xf32> -> vector<4x256xf32>
    %49 = arith.addf %45, %48 : vector<4x256xf32>
    %c255_i32 = arith.constant 255 : i32
    %50 = tpu.dynamic_rotate %8 by %c255_i32 dim 1 : vector<4x256xf32>, i32 -> vector<4x256xf32>
    %c5 = arith.constant 5 : index
    %c0_36 = arith.constant 0 : index
    %c0_37 = arith.constant 0 : index
    %51 = vector.load %arg8[%c5, %c0_36, %c0_37] : memref<9x1x256xf32, #tpu.memory_space<vmem>>, vector<1x1x256xf32>
    %52 = vector.shape_cast %51 : vector<1x1x256xf32> to vector<1x256xf32>
    %53 = vector.broadcast %52 : vector<1x256xf32> to vector<4x256xf32>
    %54 = arith.mulf %50, %53 : vector<4x256xf32>
    %c5_38 = arith.constant 5 : index
    %c0_39 = arith.constant 0 : index
    %c0_40 = arith.constant 0 : index
    %55 = vector.load %arg4[%c5_38, %c0_39, %c0_40] : memref<9x4x4xf32, #tpu.memory_space<vmem>>, vector<1x4x4xf32>
    %56 = vector.shape_cast %55 : vector<1x4x4xf32> to vector<4x4xf32>
    %cst_41 = arith.constant dense<0.000000e+00> : vector<4x256xf32>
    %57 = tpu.matmul %56, %54, %cst_41 {dimension_numbers = #tpu.dot_dimension_numbers<[1], [0], [0], [1], [0, 0, 1, 1], [], []>} : vector<4x4xf32>, vector<4x256xf32>, vector<4x256xf32> -> vector<4x256xf32>
    %58 = arith.addf %49, %57 : vector<4x256xf32>
    %c241_i32 = arith.constant 241 : i32
    %59 = tpu.dynamic_rotate %8 by %c241_i32 dim 1 : vector<4x256xf32>, i32 -> vector<4x256xf32>
    %c6 = arith.constant 6 : index
    %c0_42 = arith.constant 0 : index
    %c0_43 = arith.constant 0 : index
    %60 = vector.load %arg8[%c6, %c0_42, %c0_43] : memref<9x1x256xf32, #tpu.memory_space<vmem>>, vector<1x1x256xf32>
    %61 = vector.shape_cast %60 : vector<1x1x256xf32> to vector<1x256xf32>
    %62 = vector.broadcast %61 : vector<1x256xf32> to vector<4x256xf32>
    %63 = arith.mulf %59, %62 : vector<4x256xf32>
    %c6_44 = arith.constant 6 : index
    %c0_45 = arith.constant 0 : index
    %c0_46 = arith.constant 0 : index
    %64 = vector.load %arg4[%c6_44, %c0_45, %c0_46] : memref<9x4x4xf32, #tpu.memory_space<vmem>>, vector<1x4x4xf32>
    %65 = vector.shape_cast %64 : vector<1x4x4xf32> to vector<4x4xf32>
    %cst_47 = arith.constant dense<0.000000e+00> : vector<4x256xf32>
    %66 = tpu.matmul %65, %63, %cst_47 {dimension_numbers = #tpu.dot_dimension_numbers<[1], [0], [0], [1], [0, 0, 1, 1], [], []>} : vector<4x4xf32>, vector<4x256xf32>, vector<4x256xf32> -> vector<4x256xf32>
    %67 = arith.addf %58, %66 : vector<4x256xf32>
    %c240_i32 = arith.constant 240 : i32
    %68 = tpu.dynamic_rotate %8 by %c240_i32 dim 1 : vector<4x256xf32>, i32 -> vector<4x256xf32>
    %c7 = arith.constant 7 : index
    %c0_48 = arith.constant 0 : index
    %c0_49 = arith.constant 0 : index
    %69 = vector.load %arg8[%c7, %c0_48, %c0_49] : memref<9x1x256xf32, #tpu.memory_space<vmem>>, vector<1x1x256xf32>
    %70 = vector.shape_cast %69 : vector<1x1x256xf32> to vector<1x256xf32>
    %71 = vector.broadcast %70 : vector<1x256xf32> to vector<4x256xf32>
    %72 = arith.mulf %68, %71 : vector<4x256xf32>
    %c7_50 = arith.constant 7 : index
    %c0_51 = arith.constant 0 : index
    %c0_52 = arith.constant 0 : index
    %73 = vector.load %arg4[%c7_50, %c0_51, %c0_52] : memref<9x4x4xf32, #tpu.memory_space<vmem>>, vector<1x4x4xf32>
    %74 = vector.shape_cast %73 : vector<1x4x4xf32> to vector<4x4xf32>
    %cst_53 = arith.constant dense<0.000000e+00> : vector<4x256xf32>
    %75 = tpu.matmul %74, %72, %cst_53 {dimension_numbers = #tpu.dot_dimension_numbers<[1], [0], [0], [1], [0, 0, 1, 1], [], []>} : vector<4x4xf32>, vector<4x256xf32>, vector<4x256xf32> -> vector<4x256xf32>
    %76 = arith.addf %67, %75 : vector<4x256xf32>
    %c239_i32 = arith.constant 239 : i32
    %77 = tpu.dynamic_rotate %8 by %c239_i32 dim 1 : vector<4x256xf32>, i32 -> vector<4x256xf32>
    %c8 = arith.constant 8 : index
    %c0_54 = arith.constant 0 : index
    %c0_55 = arith.constant 0 : index
    %78 = vector.load %arg8[%c8, %c0_54, %c0_55] : memref<9x1x256xf32, #tpu.memory_space<vmem>>, vector<1x1x256xf32>
    %79 = vector.shape_cast %78 : vector<1x1x256xf32> to vector<1x256xf32>
    %80 = vector.broadcast %79 : vector<1x256xf32> to vector<4x256xf32>
    %81 = arith.mulf %77, %80 : vector<4x256xf32>
    %c8_56 = arith.constant 8 : index
    %c0_57 = arith.constant 0 : index
    %c0_58 = arith.constant 0 : index
    %82 = vector.load %arg4[%c8_56, %c0_57, %c0_58] : memref<9x4x4xf32, #tpu.memory_space<vmem>>, vector<1x4x4xf32>
    %83 = vector.shape_cast %82 : vector<1x4x4xf32> to vector<4x4xf32>
    %cst_59 = arith.constant dense<0.000000e+00> : vector<4x256xf32>
    %84 = tpu.matmul %83, %81, %cst_59 {dimension_numbers = #tpu.dot_dimension_numbers<[1], [0], [0], [1], [0, 0, 1, 1], [], []>} : vector<4x4xf32>, vector<4x256xf32>, vector<4x256xf32> -> vector<4x256xf32>
    %85 = arith.addf %76, %84 : vector<4x256xf32>
    %c0_60 = arith.constant 0 : index
    %c0_61 = arith.constant 0 : index
    %86 = vector.load %arg5[%c0_60, %c0_61] : memref<4x1xf32, #tpu.memory_space<vmem>>, vector<4x1xf32>
    %87 = vector.broadcast %86 : vector<4x1xf32> to vector<4x256xf32>
    %88 = arith.addf %85, %87 : vector<4x256xf32>
    %cst_62 = arith.constant 0.000000e+00 : f32
    %89 = vector.broadcast %cst_62 : f32 to vector<4x256xf32>
    %90 = arith.maximumf %88, %89 : vector<4x256xf32>
    %c0_63 = arith.constant 0 : index
    %c0_64 = arith.constant 0 : index
    %91 = vector.load %arg6[%c0_63, %c0_64] : memref<16x4xf32, #tpu.memory_space<vmem>>, vector<16x4xf32>
    %cst_65 = arith.constant dense<0.000000e+00> : vector<16x256xf32>
    %92 = tpu.matmul %91, %90, %cst_65 {dimension_numbers = #tpu.dot_dimension_numbers<[1], [0], [0], [1], [0, 0, 1, 1], [], []>} : vector<16x4xf32>, vector<4x256xf32>, vector<16x256xf32> -> vector<16x256xf32>
    %c0_66 = arith.constant 0 : index
    %c0_67 = arith.constant 0 : index
    %93 = vector.load %arg7[%c0_66, %c0_67] : memref<16x1xf32, #tpu.memory_space<vmem>>, vector<16x1xf32>
    %94 = vector.broadcast %93 : vector<16x1xf32> to vector<16x256xf32>
    %95 = arith.addf %92, %94 : vector<16x256xf32>
    %96 = arith.addf %95, %1 : vector<16x256xf32>
    %cst_68 = arith.constant 0.000000e+00 : f32
    %97 = vector.broadcast %cst_68 : f32 to vector<16x256xf32>
    %98 = arith.maximumf %96, %97 : vector<16x256xf32>
    %c0_69 = arith.constant 0 : index
    %c0_70 = arith.constant 0 : index
    %c0_71 = arith.constant 0 : index
    %99 = vector.load %arg9[%c0_69, %c0_70, %c0_71] : memref<1x16x256xf32, #tpu.memory_space<vmem>>, vector<1x16x256xf32>
    %100 = vector.shape_cast %99 : vector<1x16x256xf32> to vector<16x256xf32>
    %101 = vector.shape_cast %98 : vector<16x256xf32> to vector<1x16x256xf32>
    tpu.vector_store %arg9[%c0_69, %c0_70, %c0_71], %101 {strides = array<i32>} : memref<1x16x256xf32, #tpu.memory_space<vmem>>, vector<1x16x256xf32>,
    return
  }
  func.func @transform_0(%arg0: i32) -> (i32, i32, i32) {
    %c0_i32 = arith.constant 0 : i32
    %c0_i32_0 = arith.constant 0 : i32
    %c0_i32_1 = arith.constant 0 : i32
    return %arg0, %c0_i32, %c0_i32_0 : i32, i32, i32
  }
  func.func @transform_1(%arg0: i32) -> (i32, i32) {
    %c0_i32 = arith.constant 0 : i32
    %c0_i32_0 = arith.constant 0 : i32
    %c0_i32_1 = arith.constant 0 : i32
    return %c0_i32, %c0_i32_0 : i32, i32
  }
  func.func @transform_2(%arg0: i32) -> (i32, i32) {
    %c0_i32 = arith.constant 0 : i32
    %c0_i32_0 = arith.constant 0 : i32
    %c0_i32_1 = arith.constant 0 : i32
    return %c0_i32, %c0_i32_0 : i32, i32
  }
  func.func @transform_3(%arg0: i32) -> (i32, i32, i32) {
    %c0_i32 = arith.constant 0 : i32
    %c0_i32_0 = arith.constant 0 : i32
    %c0_i32_1 = arith.constant 0 : i32
    %c0_i32_2 = arith.constant 0 : i32
    return %c0_i32, %c0_i32_0, %c0_i32_1 : i32, i32, i32
  }
  func.func @transform_4(%arg0: i32) -> (i32, i32) {
    %c0_i32 = arith.constant 0 : i32
    %c0_i32_0 = arith.constant 0 : i32
    %c0_i32_1 = arith.constant 0 : i32
    return %c0_i32, %c0_i32_0 : i32, i32
  }
  func.func @transform_5(%arg0: i32) -> (i32, i32) {
    %c0_i32 = arith.constant 0 : i32
    %c0_i32_0 = arith.constant 0 : i32
    %c0_i32_1 = arith.constant 0 : i32
    return %c0_i32, %c0_i32_0 : i32, i32
  }
  func.func @transform_6(%arg0: i32) -> (i32, i32) {
    %c0_i32 = arith.constant 0 : i32
    %c0_i32_0 = arith.constant 0 : i32
    %c0_i32_1 = arith.constant 0 : i32
    return %c0_i32, %c0_i32_0 : i32, i32
  }
  func.func @transform_7(%arg0: i32) -> (i32, i32, i32) {
    %c0_i32 = arith.constant 0 : i32
    %c0_i32_0 = arith.constant 0 : i32
    %c0_i32_1 = arith.constant 0 : i32
    %c0_i32_2 = arith.constant 0 : i32
    return %c0_i32, %c0_i32_0, %c0_i32_1 : i32, i32, i32
  }
  func.func @transform_8(%arg0: i32) -> (i32, i32, i32) {
    %c0_i32 = arith.constant 0 : i32
    %c0_i32_0 = arith.constant 0 : i32
    %c0_i32_1 = arith.constant 0 : i32
    return %arg0, %c0_i32, %c0_i32_0 : i32, i32, i32
  }
}

</mosaic_0001>

<llo_original>
// kernel: bottleneck_forward.1
$region0: #{bottleneck_forward.1}
  #allocation0 [shape = 'u32[]', space=smem, size = 0x4, offset = 0x4, fixed_abs, tag = 'smem constant byte address 0x4 - core index']
  #allocation1 [shape = 'u32[144,128]{1,0:T(1,128)}', space=vmem, size = 0x12000, scoped, tag = 'internal scratch']
  %s0 = inlined_call_operand.vmem [shape: f32[2,16,256], index: 0, kind: input, shape index: {}]
  %s1 = inlined_call_operand.vmem [shape: f32[4,16], index: 1, kind: input, shape index: {}]
  %s2 = inlined_call_operand.vmem [shape: f32[4,1], index: 2, kind: input, shape index: {}]
  %s3 = inlined_call_operand.vmem [shape: f32[9,4,4], index: 3, kind: input, shape index: {}]
  %s4 = inlined_call_operand.vmem [shape: f32[4,1], index: 4, kind: input, shape index: {}]
  %s5 = inlined_call_operand.vmem [shape: f32[16,4], index: 5, kind: input, shape index: {}]
  %s6 = inlined_call_operand.vmem [shape: f32[16,1], index: 6, kind: input, shape index: {}]
  %s7 = inlined_call_operand.vmem [shape: f32[9,1,256], index: 7, kind: input, shape index: {}]
  %s8 = inlined_call_operand.vmem [shape: f32[2,16,256], index: 8, kind: output, shape index: {}]
  %s9 = sld [smem:[#allocation0]]
  $region65: #{bottleneck_forward.1} parent=0
    _
  %s11 = ssub.s32 1, %s9
  %s12 = scalar_select 0, %s11, %s9
  loop: start=0, step=1, limit=4
  $region2: #{bottleneck_forward.1} parent=0 // loop_pre_header
    _
  $region3: #{bottleneck_forward.1} parent=0 // loop_header
    %s14 = sphi 0, %s18
    %p15 = scmp.ge.s32.totalorder %s14, 4
    %s24 = sphi 0, %s26
    %s27 = sphi 0, %s24
    %s28 = sphi 0, %s27
    %s44 = sphi 0, %s28
    %s48 = sphi 0, %s48
    %s50 = sphi 0, %s48
    %s51 = sphi 0, %s50
    %s65 = sphi 0, %s51
    %s69 = sphi 0, %s69
    %s71 = sphi 0, %s69
    %s72 = sphi 0, %s71
    %s86 = sphi 0, %s72
    %s90 = sphi 0, %s90
    %s92 = sphi 0, %s90
    %s93 = sphi 0, %s92
    %s107 = sphi 0, %s93
    %s111 = sphi 0, %s111
    %s113 = sphi 0, %s111
    %s114 = sphi 0, %s113
    %s128 = sphi 0, %s114
    %s132 = sphi 0, %s132
    %s134 = sphi 0, %s132
    %s135 = sphi 0, %s134
    %s149 = sphi 0, %s135
    %s153 = sphi 0, %s153
    %s155 = sphi 0, %s153
    %s156 = sphi 0, %s155
    %s170 = sphi 0, %s156
    %s174 = sphi 0, %s174
    %s176 = sphi 0, %s174
    %s177 = sphi 0, %s176
    %s191 = sphi 0, %s177
    %s197 = sphi 0, %s199
    %s200 = sphi 0, %s197
    %s201 = sphi 0, %s200
    %s217 = sphi 0, %s201
  $region4: #{bottleneck_forward.1} parent=0 // loop_header_branch
    %17 = sbr.rel (%p15) target = $region8
  $region5: #{bottleneck_forward.1} parent=0 // loop_body
    %s19 = ssub.s32 %s14, 1
    %s20 = ssub.s32 %s14, 2
    %s21 = sadd.s32 %s14, 1
    %s22 = ssub.s32 %s14, %s21
    %p23 = scmp.eq.s32.totalorder %s22, 0
    %s25 = sadd.s32 %s24, 1
    %s26 = scalar_select %p23, %s24, %s25
    %p29 = pneg %p23
    %p30 = scmp.eq.s32.totalorder %s14, 1
    %p31 = por %p29, %p30
    %p32 = scmp.ne.s32.totalorder %s24, %s27
    %p33 = scmp.eq.s32.totalorder %s14, 0
    %p34 = por %p32, %p33
    %p35 = scmp.ne.s32.totalorder %s24, %s27
    %p36 = scmp.eq.s32.totalorder %s19, 1
    %p37 = por %p35, %p36
    %p38 = scmp.ne.s32.totalorder %s27, %s28
    %p39 = scmp.eq.s32.totalorder %s19, 0
    %p40 = por %p38, %p39
    %p41 = scmp.ne.s32.totalorder %s27, %s28
    %p42 = scmp.eq.s32.totalorder %s20, 1
    %p43 = por %p41, %p42
    %p45 = scmp.ne.s32.totalorder %s28, %s44
    %p46 = scmp.eq.s32.totalorder %s20, 0
    %p47 = por %p45, %p46
    %s49 = sadd.s32 %s48, 1
    %p52 = scmp.eq.s32.totalorder %s14, 1
    %p53 = scmp.ne.s32.totalorder %s48, %s50
    %p54 = scmp.eq.s32.totalorder %s14, 0
    %p55 = por %p53, %p54
    %p56 = scmp.ne.s32.totalorder %s48, %s50
    %p57 = scmp.eq.s32.totalorder %s19, 1
    %p58 = por %p56, %p57
    %p59 = scmp.ne.s32.totalorder %s50, %s51
    %p60 = scmp.eq.s32.totalorder %s19, 0
    %p61 = por %p59, %p60
    %p62 = scmp.ne.s32.totalorder %s50, %s51
    %p63 = scmp.eq.s32.totalorder %s20, 1
    %p64 = por %p62, %p63
    %p66 = scmp.ne.s32.totalorder %s51, %s65
    %p67 = scmp.eq.s32.totalorder %s20, 0
    %p68 = por %p66, %p67
    %s70 = sadd.s32 %s69, 1
    %p73 = scmp.eq.s32.totalorder %s14, 1
    %p74 = scmp.ne.s32.totalorder %s69, %s71
    %p75 = scmp.eq.s32.totalorder %s14, 0
    %p76 = por %p74, %p75
    %p77 = scmp.ne.s32.totalorder %s69, %s71
    %p78 = scmp.eq.s32.totalorder %s19, 1
    %p79 = por %p77, %p78
    %p80 = scmp.ne.s32.totalorder %s71, %s72
    %p81 = scmp.eq.s32.totalorder %s19, 0
    %p82 = por %p80, %p81
    %p83 = scmp.ne.s32.totalorder %s71, %s72
    %p84 = scmp.eq.s32.totalorder %s20, 1
    %p85 = por %p83, %p84
    %p87 = scmp.ne.s32.totalorder %s72, %s86
    %p88 = scmp.eq.s32.totalorder %s20, 0
    %p89 = por %p87, %p88
    %s91 = sadd.s32 %s90, 1
    %p94 = scmp.eq.s32.totalorder %s14, 1
    %p95 = scmp.ne.s32.totalorder %s90, %s92
    %p96 = scmp.eq.s32.totalorder %s14, 0
    %p97 = por %p95, %p96
    %p98 = scmp.ne.s32.totalorder %s90, %s92
    %p99 = scmp.eq.s32.totalorder %s19, 1
    %p100 = por %p98, %p99
    %p101 = scmp.ne.s32.totalorder %s92, %s93
    %p102 = scmp.eq.s32.totalorder %s19, 0
    %p103 = por %p101, %p102
    %p104 = scmp.ne.s32.totalorder %s92, %s93
    %p105 = scmp.eq.s32.totalorder %s20, 1
    %p106 = por %p104, %p105
    %p108 = scmp.ne.s32.totalorder %s93, %s107
    %p109 = scmp.eq.s32.totalorder %s20, 0
    %p110 = por %p108, %p109
    %s112 = sadd.s32 %s111, 1
    %p115 = scmp.eq.s32.totalorder %s14, 1
    %p116 = scmp.ne.s32.totalorder %s111, %s113
    %p117 = scmp.eq.s32.totalorder %s14, 0
    %p118 = por %p116, %p117
    %p119 = scmp.ne.s32.totalorder %s111, %s113
    %p120 = scmp.eq.s32.totalorder %s19, 1
    %p121 = por %p119, %p120
    %p122 = scmp.ne.s32.totalorder %s113, %s114
    %p123 = scmp.eq.s32.totalorder %s19, 0
    %p124 = por %p122, %p123
    %p125 = scmp.ne.s32.totalorder %s113, %s114
    %p126 = scmp.eq.s32.totalorder %s20, 1
    %p127 = por %p125, %p126
    %p129 = scmp.ne.s32.totalorder %s114, %s128
    %p130 = scmp.eq.s32.totalorder %s20, 0
    %p131 = por %p129, %p130
    %s133 = sadd.s32 %s132, 1
    %p136 = scmp.eq.s32.totalorder %s14, 1
    %p137 = scmp.ne.s32.totalorder %s132, %s134
    %p138 = scmp.eq.s32.totalorder %s14, 0
    %p139 = por %p137, %p138
    %p140 = scmp.ne.s32.totalorder %s132, %s134
    %p141 = scmp.eq.s32.totalorder %s19, 1
    %p142 = por %p140, %p141
    %p143 = scmp.ne.s32.totalorder %s134, %s135
    %p144 = scmp.eq.s32.totalorder %s19, 0
    %p145 = por %p143, %p144
    %p146 = scmp.ne.s32.totalorder %s134, %s135
    %p147 = scmp.eq.s32.totalorder %s20, 1
    %p148 = por %p146, %p147
    %p150 = scmp.ne.s32.totalorder %s135, %s149
    %p151 = scmp.eq.s32.totalorder %s20, 0
    %p152 = por %p150, %p151
    %s154 = sadd.s32 %s153, 1
    %p157 = scmp.eq.s32.totalorder %s14, 1
    %p158 = scmp.ne.s32.totalorder %s153, %s155
    %p159 = scmp.eq.s32.totalorder %s14, 0
    %p160 = por %p158, %p159
    %p161 = scmp.ne.s32.totalorder %s153, %s155
    %p162 = scmp.eq.s32.totalorder %s19, 1
    %p163 = por %p161, %p162
    %p164 = scmp.ne.s32.totalorder %s155, %s156
    %p165 = scmp.eq.s32.totalorder %s19, 0
    %p166 = por %p164, %p165
    %p167 = scmp.ne.s32.totalorder %s155, %s156
    %p168 = scmp.eq.s32.totalorder %s20, 1
    %p169 = por %p167, %p168
    %p171 = scmp.ne.s32.totalorder %s156, %s170
    %p172 = scmp.eq.s32.totalorder %s20, 0
    %p173 = por %p171, %p172
    %s175 = sadd.s32 %s174, 1
    %p178 = scmp.eq.s32.totalorder %s14, 1
    %p179 = scmp.ne.s32.totalorder %s174, %s176
    %p180 = scmp.eq.s32.totalorder %s14, 0
    %p181 = por %p179, %p180
    %p182 = scmp.ne.s32.totalorder %s174, %s176
    %p183 = scmp.eq.s32.totalorder %s19, 1
    %p184 = por %p182, %p183
    %p185 = scmp.ne.s32.totalorder %s176, %s177
    %p186 = scmp.eq.s32.totalorder %s19, 0
    %p187 = por %p185, %p186
    %p188 = scmp.ne.s32.totalorder %s176, %s177
    %p189 = scmp.eq.s32.totalorder %s20, 1
    %p190 = por %p188, %p189
    %p192 = scmp.ne.s32.totalorder %s177, %s191
    %p193 = scmp.eq.s32.totalorder %s20, 0
    %p194 = por %p192, %p193
    %s195 = ssub.s32 %s14, %s21
    %p196 = scmp.eq.s32.totalorder %s195, 0
    %s198 = sadd.s32 %s197, 1
    %s199 = scalar_select %p196, %s197, %s198
    %p202 = pneg %p196
    %p203 = scmp.eq.s32.totalorder %s14, 1
    %p204 = por %p202, %p203
    %p205 = scmp.ne.s32.totalorder %s197, %s200
    %p206 = scmp.eq.s32.totalorder %s14, 0
    %p207 = por %p205, %p206
    %p208 = scmp.ne.s32.totalorder %s197, %s200
    %p209 = scmp.eq.s32.totalorder %s19, 1
    %p210 = por %p208, %p209
    %p211 = scmp.ne.s32.totalorder %s200, %s201
    %p212 = scmp.eq.s32.totalorder %s19, 0
    %p213 = por %p211, %p212
    %p214 = scmp.ne.s32.totalorder %s200, %s201
    %p215 = scmp.eq.s32.totalorder %s20, 1
    %p216 = por %p214, %p215
    %p218 = scmp.ne.s32.totalorder %s201, %s217
    %p219 = scmp.eq.s32.totalorder %s20, 0
    %p220 = por %p218, %p219
    %p221 = scmp.le.s32.totalorder 1, %s14
    %p222 = scmp.lt.s32.totalorder %s14, 3
    %p223 = pnand %p221, %p222
    %p224 = pneg %p223
    // Predicated region
    $region9: #{bottleneck_forward.1} parent=5 // pred_check
      _
    $region10: #{bottleneck_forward.1} parent=5 // pred_check_branch
      %226 = sbr.rel (%p223) target = $region12
    $region11: #{bottleneck_forward.1} parent=5 // pred_region
      %s227 = ssub.s32 %s14, 1
      // Predicated region
      $region13: #{bottleneck_forward.1} parent=11 // pred_check
        %p228 = pneg %p61
      $region14: #{bottleneck_forward.1} parent=11 // pred_check_branch
        %230 = sbr.rel (%p228) target = $region16
      $region15: #{bottleneck_forward.1} parent=11 // pred_region
        _
      $region16: #{bottleneck_forward.1} parent=11 // pred_fallthru
        _
      // Predicated region
      $region17: #{bottleneck_forward.1} parent=11 // pred_check
        %p231 = pneg %p82
      $region18: #{bottleneck_forward.1} parent=11 // pred_check_branch
        %233 = sbr.rel (%p231) target = $region20
      $region19: #{bottleneck_forward.1} parent=11 // pred_region
        _
      $region20: #{bottleneck_forward.1} parent=11 // pred_fallthru
        _
      // Predicated region
      $region21: #{bottleneck_forward.1} parent=11 // pred_check
        %p234 = pneg %p103
      $region22: #{bottleneck_forward.1} parent=11 // pred_check_branch
        %236 = sbr.rel (%p234) target = $region24
      $region23: #{bottleneck_forward.1} parent=11 // pred_region
        _
      $region24: #{bottleneck_forward.1} parent=11 // pred_fallthru
        _
      // Predicated region
      $region25: #{bottleneck_forward.1} parent=11 // pred_check
        %p237 = pneg %p124
      $region26: #{bottleneck_forward.1} parent=11 // pred_check_branch
        %239 = sbr.rel (%p237) target = $region28
      $region27: #{bottleneck_forward.1} parent=11 // pred_region
        _
      $region28: #{bottleneck_forward.1} parent=11 // pred_fallthru
        _
      // Predicated region
      $region29: #{bottleneck_forward.1} parent=11 // pred_check
        %p240 = pneg %p145
      $region30: #{bottleneck_forward.1} parent=11 // pred_check_branch
        %242 = sbr.rel (%p240) target = $region32
      $region31: #{bottleneck_forward.1} parent=11 // pred_region
        _
      $region32: #{bottleneck_forward.1} parent=11 // pred_fallthru
        _
      // Predicated region
      $region33: #{bottleneck_forward.1} parent=11 // pred_check
        %p243 = pneg %p166
      $region34: #{bottleneck_forward.1} parent=11 // pred_check_branch
        %245 = sbr.rel (%p243) target = $region36
      $region35: #{bottleneck_forward.1} parent=11 // pred_region
        _
      $region36: #{bottleneck_forward.1} parent=11 // pred_fallthru
        _
      // Predicated region
      $region37: #{bottleneck_forward.1} parent=11 // pred_check
        %p246 = pneg %p187
      $region38: #{bottleneck_forward.1} parent=11 // pred_check_branch
        %248 = sbr.rel (%p246) target = $region40
      $region39: #{bottleneck_forward.1} parent=11 // pred_region
        _
      $region40: #{bottleneck_forward.1} parent=11 // pred_fallthru
        _
    $region12: #{bottleneck_forward.1} parent=5 // pred_fallthru
      _
    %p249 = scmp.lt.s32.totalorder %s14, 2
    // Predicated region
    $region41: #{bottleneck_forward.1} parent=5 // pred_check
      %p250 = pneg %p249
    $region42: #{bottleneck_forward.1} parent=5 // pred_check_branch
      %252 = sbr.rel (%p250) target = $region44
    $region43: #{bottleneck_forward.1} parent=5 // pred_region
      // Predicated region
      $region45: #{bottleneck_forward.1} parent=43 // pred_check
        %p253 = pneg %p34
      $region46: #{bottleneck_forward.1} parent=43 // pred_check_branch
        %255 = sbr.rel (%p253) target = $region48
      $region47: #{bottleneck_forward.1} parent=43 // pred_region
        %p256 = scmp.lt.s32.totalorder %s14, 1
        %s257 = scalar_select %p256, %s14, 1
        %s258 = smul.addr %s257, 4
        %s259 = smul.addr %s258, 8
        %s260 = scalar_lea.vmem %s0, %s259
      $region48: #{bottleneck_forward.1} parent=43 // pred_fallthru
        _
    $region44: #{bottleneck_forward.1} parent=5 // pred_fallthru
      _
    %p261 = scmp.le.s32.totalorder 1, %s14
    %p262 = scmp.lt.s32.totalorder %s14, 3
    %p263 = pnand %p261, %p262
    %p264 = pneg %p263
    // Predicated region
    $region49: #{bottleneck_forward.1} parent=5 // pred_check
      _
    $region50: #{bottleneck_forward.1} parent=5 // pred_check_branch
      %266 = sbr.rel (%p263) target = $region52
    $region51: #{bottleneck_forward.1} parent=5 // pred_region
      %s267 = ssub.s32 %s14, 1
      %p268 = scmp.lt.s32.totalorder %s19, 1
      %s269 = scalar_select %p268, %s19, 1
      %s270 = smul.addr %s269, 4
      %s271 = smul.addr %s270, 8
      %s272 = scalar_lea.vmem %s0, %s271
      %p273 = pneg %p40
      %p274 = pneg %p37
      %p275 = pneg %p61
      %p276 = pneg %p58
      %p277 = pneg %p82
      %p278 = pneg %p79
      %p279 = pneg %p103
      %p280 = pneg %p100
      %p281 = pneg %p124
      %p282 = pneg %p121
      %p283 = pneg %p145
      %p284 = pneg %p142
      %p285 = pneg %p166
      %p286 = pneg %p163
      %p287 = pneg %p187
      %p288 = pneg %p184
      %p289 = pneg %p213
      %p290 = pneg %p210
      %p291 = scmp.lt.s32.totalorder %s19, 1
      %s292 = scalar_select %p291, %s19, 1
      %s293 = smul.addr %s292, 4
      %s294 = smul.addr %s293, 8
      %s295 = scalar_lea.vmem %s8, %s294
      %p296 = scmp.lt.s32.totalorder %s19, 1
      %s297 = scalar_select %p296, %s19, 1
      %s298 = smul.addr %s297, 4
      %s299 = smul.addr %s298, 8
      %s300 = scalar_lea.vmem %s0, %s299
      %p301 = scmp.lt.s32.totalorder %s19, 1
      %s302 = scalar_select %p301, %s19, 1
      %s303 = smul.addr %s302, 4
      %s304 = smul.addr %s303, 8
      %s305 = scalar_lea.vmem %s8, %s304
      %v306 = vld [vmem:[%s300] sm:$0xff]
      %v307 = vld [vmem:[%s300 + $0x8] sm:$0xff]
      %v308 = vld [vmem:[%s300 + $0x10] sm:$0xff]
      %v309 = vld [vmem:[%s300 + $0x18] sm:$0xff]
      %v310 = vld [vmem:[%s1] sm:$0xf]
      %v311 = vld [vmem:[%s2] sm:$0xf]
      %313 = vset.pattern.permute.xlu0 0
      %314 = vperm.xlu0 %313, %v311
      %v315 = vpop.permute.xlu0 %314
      %vm317 = vcmask 130048
      %v319 = vsel %vm317, %v310, 0
      %321 = vmatprep.subr.mxu0 %v307
      %322 = vmatpush1.msra.mxu0 %v306
      %323 = vmatprep.subr.mxu0 %v309
      %324 = vmatpush1.msra.mxu0 %v308
      %325 = vmatprep.subr.mxu0 0.0
      %326 = vmatpush1.msra.mxu0 0.0
      %327 = vmatprep.subr.mxu0 0.0
      %328 = vmatpush1.msra.mxu0 0.0
      %329 = vmatprep.subr.mxu0 0.0
      %330 = vmatpush1.msra.mxu0 0.0
      %331 = vmatprep.subr.mxu0 0.0
      %332 = vmatpush1.msra.mxu0 0.0
      %333 = vmatprep.subr.mxu0 0.0
      %334 = vmatpush1.msra.mxu0 0.0
      %335 = vmatprep.subr.mxu0 0.0
      %336 = vmatpush1.msra.mxu0 0.0
      %337 = vmatprep.subr.mxu0 0.0
      %338 = vmatpush1.msra.mxu0 0.0
      %339 = vmatprep.subr.mxu0 0.0
      %340 = vmatpush1.msra.mxu0 0.0
      %341 = vmatprep.subr.mxu0 0.0
      %342 = vmatpush1.msra.mxu0 0.0
      %343 = vmatprep.subr.mxu0 0.0
      %344 = vmatpush1.msra.mxu0 0.0
      %345 = vmatprep.subr.mxu0 0.0
      %346 = vmatpush1.msra.mxu0 0.0
      %347 = vmatprep.subr.mxu0 0.0
      %348 = vmatpush1.msra.mxu0 0.0
      %349 = vmatprep.subr.mxu0 0.0
      %350 = vmatpush1.msra.mxu0 0.0
      %351 = vmatprep.subr.mxu0 0.0
      %352 = vmatpush1.msra.mxu0 0.0
      %353 = vmatprep.subr.mxu0 0.0
      %354 = vmatpush1.msra.mxu0 0.0
      %355 = vmatprep.subr.mxu0 0.0
      %356 = vmatpush1.msra.mxu0 0.0
      %357 = vmatprep.subr.mxu0 0.0
      %358 = vmatpush1.msra.mxu0 0.0
      %359 = vmatprep.subr.mxu0 0.0
      %360 = vmatpush1.msra.mxu0 0.0
      %361 = vmatprep.subr.mxu0 0.0
      %362 = vmatpush1.msra.mxu0 0.0
      %363 = vmatprep.subr.mxu0 0.0
      %364 = vmatpush1.msra.mxu0 0.0
      %365 = vmatprep.subr.mxu0 0.0
      %366 = vmatpush1.msra.mxu0 0.0
      %367 = vmatprep.subr.mxu0 0.0
      %368 = vmatpush1.msra.mxu0 0.0
      %369 = vmatprep.subr.mxu0 0.0
      %370 = vmatpush1.msra.mxu0 0.0
      %371 = vmatprep.subr.mxu0 0.0
      %372 = vmatpush1.msra.mxu0 0.0
      %373 = vmatprep.subr.mxu0 0.0
      %374 = vmatpush1.msra.mxu0 0.0
      %375 = vmatprep.subr.mxu0 0.0
      %376 = vmatpush1.msra.mxu0 0.0
      %377 = vmatprep.subr.mxu0 0.0
      %378 = vmatpush1.msra.mxu0 0.0
      %379 = vmatprep.subr.mxu0 0.0
      %380 = vmatpush1.msra.mxu0 0.0
      %381 = vmatprep.subr.mxu0 0.0
      %382 = vmatpush1.msra.mxu0 0.0
      %383 = vmatprep.subr.mxu0 0.0
      %384 = vmatpush1.msra.mxu0 0.0
      %385 = vmatprep.mubr.f32.mxu0 0.0
      %386 = vmatmul.mubr.f32.gmra.mrb[0].mxu0 %v319
      %v387 = vpop.f32.mrb[0].mxu0
      %v388 = vadd.f32 %v315, %v387
      %v389 = vpop.f32.mrb[0].mxu0
      %v390 = vadd.f32 %v315, %v389
      %391 = vdwg.mxu0
      %v392 = vmax.f32 %v388, 0.0
      %v393 = vmax.f32 %v390, 0.0
      %394 = vrot.lane.b32.xlu0 %v392, 17
      %v395 = vpop.permute.xlu0 %394
      %396 = vrot.lane.b32.xlu0 %v393, 17
      %v397 = vpop.permute.xlu0 %396
      %v398 = vlaneseq
      %v399 = vand.u32 %v398, 127
      %vm400 = vcmp.lt.s32.totalorder %v399, 17
      %v401 = vsel %vm400, %v395, %v397
      %v402 = vsel %vm400, %v397, %v395
      %v403 = vld [vmem:[%s7] sm:$0x3]
      %v405 = vlaneseq
      %v406 = vshrl.u32 %v405, 7
      %v407 = vsub.s32 0, %v406
      %v408 = vrot.slane %v403, %v407
      %v409 = vlaneseq
      %v410 = vshrl.u32 %v409, 7
      %v411 = vsub.s32 1, %v410
      %v412 = vrot.slane %v403, %v411
      %v415 = vmul.f32 %v402, %v408
      %v416 = vmul.f32 %v401, %v412
      %v417 = vld [vmem:[%s3] sm:$0xf]
      %418 = vrot.lane.b32.xlu0 %v392, 16
      %v419 = vpop.permute.xlu0 %418
      %420 = vrot.lane.b32.xlu0 %v393, 16
      %v421 = vpop.permute.xlu0 %420
      %vm422 = vcmp.lt.s32.totalorder %v399, 16
      %v423 = vsel %vm422, %v419, %v421
      %v424 = vsel %vm422, %v421, %v419
      %s425 = scalar_lea.vmem %s7, 2
      %v426 = vld [vmem:[%s425] sm:$0x3]
      %v428 = vlaneseq
      %v429 = vshrl.u32 %v428, 7
      %v430 = vsub.s32 0, %v429
      %v431 = vrot.slane %v426, %v430
      %v432 = vlaneseq
      %v433 = vshrl.u32 %v432, 7
      %v434 = vsub.s32 1, %v433
      %v435 = vrot.slane %v426, %v434
      %v438 = vmul.f32 %v424, %v431
      %v439 = vmul.f32 %v423, %v435
      %s440 = scalar_lea.vmem %s3, 4
      %v441 = vld [vmem:[%s440] sm:$0xf]
      %vm442 = vcmask 31744
      %v444 = vsel %vm442, %v441, 0
      %vm446 = vcmask 1043456
      %v448 = vsel %vm446, %v438, 0
      %v451 = vsel %vm446, %v439, 0
      %453 = vmatprep.subr.mxu0 %v451
      %454 = vmatpush1.msra.mxu0 %v448
      %455 = vmatprep.subr.mxu0 0.0
      %456 = vmatpush1.msra.mxu0 0.0
      %457 = vmatprep.subr.mxu0 0.0
      %458 = vmatpush1.msra.mxu0 0.0
      %459 = vmatprep.subr.mxu0 0.0
      %460 = vmatpush1.msra.mxu0 0.0
      %461 = vmatprep.subr.mxu0 0.0
      %462 = vmatpush1.msra.mxu0 0.0
      %463 = vmatprep.subr.mxu0 0.0
      %464 = vmatpush1.msra.mxu0 0.0
      %465 = vmatprep.subr.mxu0 0.0
      %466 = vmatpush1.msra.mxu0 0.0
      %467 = vmatprep.subr.mxu0 0.0
      %468 = vmatpush1.msra.mxu0 0.0
      %469 = vmatprep.subr.mxu0 0.0
      %470 = vmatpush1.msra.mxu0 0.0
      %471 = vmatprep.subr.mxu0 0.0
      %472 = vmatpush1.msra.mxu0 0.0
      %473 = vmatprep.subr.mxu0 0.0
      %474 = vmatpush1.msra.mxu0 0.0
      %475 = vmatprep.subr.mxu0 0.0
      %476 = vmatpush1.msra.mxu0 0.0
      %477 = vmatprep.subr.mxu0 0.0
      %478 = vmatpush1.msra.mxu0 0.0
      %479 = vmatprep.subr.mxu0 0.0
      %480 = vmatpush1.msra.mxu0 0.0
      %481 = vmatprep.subr.mxu0 0.0
      %482 = vmatpush1.msra.mxu0 0.0
      %483 = vmatprep.subr.mxu0 0.0
      %484 = vmatpush1.msra.mxu0 0.0
      %485 = vmatprep.subr.mxu0 0.0
      %486 = vmatpush1.msra.mxu0 0.0
      %487 = vmatprep.subr.mxu0 0.0
      %488 = vmatpush1.msra.mxu0 0.0
      %489 = vmatprep.subr.mxu0 0.0
      %490 = vmatpush1.msra.mxu0 0.0
      %491 = vmatprep.subr.mxu0 0.0
      %492 = vmatpush1.msra.mxu0 0.0
      %493 = vmatprep.subr.mxu0 0.0
      %494 = vmatpush1.msra.mxu0 0.0
      %495 = vmatprep.subr.mxu0 0.0
      %496 = vmatpush1.msra.mxu0 0.0
      %497 = vmatprep.subr.mxu0 0.0
      %498 = vmatpush1.msra.mxu0 0.0
      %499 = vmatprep.subr.mxu0 0.0
      %500 = vmatpush1.msra.mxu0 0.0
      %501 = vmatprep.subr.mxu0 0.0
      %502 = vmatpush1.msra.mxu0 0.0
      %503 = vmatprep.subr.mxu0 0.0
      %504 = vmatpush1.msra.mxu0 0.0
      %505 = vmatprep.subr.mxu0 0.0
      %506 = vmatpush1.msra.mxu0 0.0
      %507 = vmatprep.subr.mxu0 0.0
      %508 = vmatpush1.msra.mxu0 0.0
      %509 = vmatprep.subr.mxu0 0.0
      %510 = vmatpush1.msra.mxu0 0.0
      %511 = vmatprep.subr.mxu0 0.0
      %512 = vmatpush1.msra.mxu0 0.0
      %513 = vmatprep.subr.mxu0 0.0
      %514 = vmatpush1.msra.mxu0 0.0
      %515 = vmatprep.subr.mxu0 0.0
      %516 = vmatpush1.msra.mxu0 0.0
      %517 = vmatprep.mubr.f32.mxu0 0.0
      %518 = vmatmul.mubr.f32.gmra.mrb[0].mxu0 %v444
      %v519 = vpop.f32.mrb[0].mxu0
      %v520 = vadd.f32 0.0, %v519
      %v521 = vpop.f32.mrb[0].mxu0
      %v522 = vadd.f32 0.0, %v521
      %523 = vdwg.mxu0
      %v525 = vsel %vm442, %v417, 0
      %v528 = vsel %vm446, %v415, 0
      %v531 = vsel %vm446, %v416, 0
      %533 = vmatprep.subr.mxu0 %v531
      %534 = vmatpush1.msra.mxu0 %v528
      %535 = vmatprep.subr.mxu0 0.0
      %536 = vmatpush1.msra.mxu0 0.0
      %537 = vmatprep.subr.mxu0 0.0
      %538 = vmatpush1.msra.mxu0 0.0
      %539 = vmatprep.subr.mxu0 0.0
      %540 = vmatpush1.msra.mxu0 0.0
      %541 = vmatprep.subr.mxu0 0.0
      %542 = vmatpush1.msra.mxu0 0.0
      %543 = vmatprep.subr.mxu0 0.0
      %544 = vmatpush1.msra.mxu0 0.0
      %545 = vmatprep.subr.mxu0 0.0
      %546 = vmatpush1.msra.mxu0 0.0
      %547 = vmatprep.subr.mxu0 0.0
      %548 = vmatpush1.msra.mxu0 0.0
      %549 = vmatprep.subr.mxu0 0.0
      %550 = vmatpush1.msra.mxu0 0.0
      %551 = vmatprep.subr.mxu0 0.0
      %552 = vmatpush1.msra.mxu0 0.0
      %553 = vmatprep.subr.mxu0 0.0
      %554 = vmatpush1.msra.mxu0 0.0
      %555 = vmatprep.subr.mxu0 0.0
      %556 = vmatpush1.msra.mxu0 0.0
      %557 = vmatprep.subr.mxu0 0.0
      %558 = vmatpush1.msra.mxu0 0.0
      %559 = vmatprep.subr.mxu0 0.0
      %560 = vmatpush1.msra.mxu0 0.0
      %561 = vmatprep.subr.mxu0 0.0
      %562 = vmatpush1.msra.mxu0 0.0
      %563 = vmatprep.subr.mxu0 0.0
      %564 = vmatpush1.msra.mxu0 0.0
      %565 = vmatprep.subr.mxu0 0.0
      %566 = vmatpush1.msra.mxu0 0.0
      %567 = vmatprep.subr.mxu0 0.0
      %568 = vmatpush1.msra.mxu0 0.0
      %569 = vmatprep.subr.mxu0 0.0
      %570 = vmatpush1.msra.mxu0 0.0
      %571 = vmatprep.subr.mxu0 0.0
      %572 = vmatpush1.msra.mxu0 0.0
      %573 = vmatprep.subr.mxu0 0.0
      %574 = vmatpush1.msra.mxu0 0.0
      %575 = vmatprep.subr.mxu0 0.0
      %576 = vmatpush1.msra.mxu0 0.0
      %577 = vmatprep.subr.mxu0 0.0
      %578 = vmatpush1.msra.mxu0 0.0
      %579 = vmatprep.subr.mxu0 0.0
      %580 = vmatpush1.msra.mxu0 0.0
      %581 = vmatprep.subr.mxu0 0.0
      %582 = vmatpush1.msra.mxu0 0.0
      %583 = vmatprep.subr.mxu0 0.0
      %584 = vmatpush1.msra.mxu0 0.0
      %585 = vmatprep.subr.mxu0 0.0
      %586 = vmatpush1.msra.mxu0 0.0
      %587 = vmatprep.subr.mxu0 0.0
      %588 = vmatpush1.msra.mxu0 0.0
      %589 = vmatprep.subr.mxu0 0.0
      %590 = vmatpush1.msra.mxu0 0.0
      %591 = vmatprep.subr.mxu0 0.0
      %592 = vmatpush1.msra.mxu0 0.0
      %593 = vmatprep.subr.mxu0 0.0
      %594 = vmatpush1.msra.mxu0 0.0
      %595 = vmatprep.subr.mxu0 0.0
      %596 = vmatpush1.msra.mxu0 0.0
      %597 = vmatprep.mubr.f32.mxu0 0.0
      %598 = vmatmul.mubr.f32.gmra.mrb[0].mxu0 %v525
      %v599 = vpop.f32.mrb[0].mxu0
      %v600 = vadd.f32 %v520, %v599
      %v601 = vpop.f32.mrb[0].mxu0
      %v602 = vadd.f32 %v522, %v601
      %603 = vdwg.mxu0
      %604 = vrot.lane.b32.xlu0 %v392, 15
      %v605 = vpop.permute.xlu0 %604
      %606 = vrot.lane.b32.xlu0 %v393, 15
      %v607 = vpop.permute.xlu0 %606
      %vm608 = vcmp.lt.s32.totalorder %v399, 15
      %v609 = vsel %vm608, %v605, %v607
      %v610 = vsel %vm608, %v607, %v605
      %s611 = scalar_lea.vmem %s7, 4
      %v612 = vld [vmem:[%s611] sm:$0x3]
      %v614 = vlaneseq
      %v615 = vshrl.u32 %v614, 7
      %v616 = vsub.s32 0, %v615
      %v617 = vrot.slane %v612, %v616
      %v618 = vlaneseq
      %v619 = vshrl.u32 %v618, 7
      %v620 = vsub.s32 1, %v619
      %v621 = vrot.slane %v612, %v620
      %v624 = vmul.f32 %v610, %v617
      %v625 = vmul.f32 %v609, %v621
      %s626 = scalar_lea.vmem %s3, 8
      %v627 = vld [vmem:[%s626] sm:$0xf]
      %v629 = vsel %vm442, %v627, 0
      %v632 = vsel %vm446, %v624, 0
      %v635 = vsel %vm446, %v625, 0
      %637 = vmatprep.subr.mxu0 %v635
      %638 = vmatpush1.msra.mxu0 %v632
      %639 = vmatprep.subr.mxu0 0.0
      %640 = vmatpush1.msra.mxu0 0.0
      %641 = vmatprep.subr.mxu0 0.0
      %642 = vmatpush1.msra.mxu0 0.0
      %643 = vmatprep.subr.mxu0 0.0
      %644 = vmatpush1.msra.mxu0 0.0
      %645 = vmatprep.subr.mxu0 0.0
      %646 = vmatpush1.msra.mxu0 0.0
      %647 = vmatprep.subr.mxu0 0.0
      %648 = vmatpush1.msra.mxu0 0.0
      %649 = vmatprep.subr.mxu0 0.0
      %650 = vmatpush1.msra.mxu0 0.0
      %651 = vmatprep.subr.mxu0 0.0
      %652 = vmatpush1.msra.mxu0 0.0
      %653 = vmatprep.subr.mxu0 0.0
      %654 = vmatpush1.msra.mxu0 0.0
      %655 = vmatprep.subr.mxu0 0.0
      %656 = vmatpush1.msra.mxu0 0.0
      %657 = vmatprep.subr.mxu0 0.0
      %658 = vmatpush1.msra.mxu0 0.0
      %659 = vmatprep.subr.mxu0 0.0
      %660 = vmatpush1.msra.mxu0 0.0
      %661 = vmatprep.subr.mxu0 0.0
      %662 = vmatpush1.msra.mxu0 0.0
      %663 = vmatprep.subr.mxu0 0.0
      %664 = vmatpush1.msra.mxu0 0.0
      %665 = vmatprep.subr.mxu0 0.0
      %666 = vmatpush1.msra.mxu0 0.0
      %667 = vmatprep.subr.mxu0 0.0
      %668 = vmatpush1.msra.mxu0 0.0
      %669 = vmatprep.subr.mxu0 0.0
      %670 = vmatpush1.msra.mxu0 0.0
      %671 = vmatprep.subr.mxu0 0.0
      %672 = vmatpush1.msra.mxu0 0.0
      %673 = vmatprep.subr.mxu0 0.0
      %674 = vmatpush1.msra.mxu0 0.0
      %675 = vmatprep.subr.mxu0 0.0
      %676 = vmatpush1.msra.mxu0 0.0
      %677 = vmatprep.subr.mxu0 0.0
      %678 = vmatpush1.msra.mxu0 0.0
      %679 = vmatprep.subr.mxu0 0.0
      %680 = vmatpush1.msra.mxu0 0.0
      %681 = vmatprep.subr.mxu0 0.0
      %682 = vmatpush1.msra.mxu0 0.0
      %683 = vmatprep.subr.mxu0 0.0
      %684 = vmatpush1.msra.mxu0 0.0
      %685 = vmatprep.subr.mxu0 0.0
      %686 = vmatpush1.msra.mxu0 0.0
      %687 = vmatprep.subr.mxu0 0.0
      %688 = vmatpush1.msra.mxu0 0.0
      %689 = vmatprep.subr.mxu0 0.0
      %690 = vmatpush1.msra.mxu0 0.0
      %691 = vmatprep.subr.mxu0 0.0
      %692 = vmatpush1.msra.mxu0 0.0
      %693 = vmatprep.subr.mxu0 0.0
      %694 = vmatpush1.msra.mxu0 0.0
      %695 = vmatprep.subr.mxu0 0.0
      %696 = vmatpush1.msra.mxu0 0.0
      %697 = vmatprep.subr.mxu0 0.0
      %698 = vmatpush1.msra.mxu0 0.0
      %699 = vmatprep.subr.mxu0 0.0
      %700 = vmatpush1.msra.mxu0 0.0
      %701 = vmatprep.mubr.f32.mxu0 0.0
      %702 = vmatmul.mubr.f32.gmra.mrb[0].mxu0 %v629
      %v703 = vpop.f32.mrb[0].mxu0
      %v704 = vadd.f32 0.0, %v703
      %v705 = vpop.f32.mrb[0].mxu0
      %v706 = vadd.f32 0.0, %v705
      %707 = vdwg.mxu0
      %v708 = vadd.f32 %v600, %v704
      %v709 = vadd.f32 %v602, %v706
      %710 = vrot.lane.b32.xlu0 %v392, 1
      %v711 = vpop.permute.xlu0 %710
      %712 = vrot.lane.b32.xlu0 %v393, 1
      %v713 = vpop.permute.xlu0 %712
      %vm714 = vcmp.lt.s32.totalorder %v399, 1
      %v715 = vsel %vm714, %v711, %v713
      %v716 = vsel %vm714, %v713, %v711
      %s717 = scalar_lea.vmem %s7, 6
      %v718 = vld [vmem:[%s717] sm:$0x3]
      %v720 = vlaneseq
      %v721 = vshrl.u32 %v720, 7
      %v722 = vsub.s32 0, %v721
      %v723 = vrot.slane %v718, %v722
      %v724 = vlaneseq
      %v725 = vshrl.u32 %v724, 7
      %v726 = vsub.s32 1, %v725
      %v727 = vrot.slane %v718, %v726
      %v730 = vmul.f32 %v716, %v723
      %v731 = vmul.f32 %v715, %v727
      %s732 = scalar_lea.vmem %s3, 12
      %v733 = vld [vmem:[%s732] sm:$0xf]
      %v735 = vsel %vm442, %v733, 0
      %v738 = vsel %vm446, %v730, 0
      %v741 = vsel %vm446, %v731, 0
      %743 = vmatprep.subr.mxu0 %v741
      %744 = vmatpush1.msra.mxu0 %v738
      %745 = vmatprep.subr.mxu0 0.0
      %746 = vmatpush1.msra.mxu0 0.0
      %747 = vmatprep.subr.mxu0 0.0
      %748 = vmatpush1.msra.mxu0 0.0
      %749 = vmatprep.subr.mxu0 0.0
      %750 = vmatpush1.msra.mxu0 0.0
      %751 = vmatprep.subr.mxu0 0.0
      %752 = vmatpush1.msra.mxu0 0.0
      %753 = vmatprep.subr.mxu0 0.0
      %754 = vmatpush1.msra.mxu0 0.0
      %755 = vmatprep.subr.mxu0 0.0
      %756 = vmatpush1.msra.mxu0 0.0
      %757 = vmatprep.subr.mxu0 0.0
      %758 = vmatpush1.msra.mxu0 0.0
      %759 = vmatprep.subr.mxu0 0.0
      %760 = vmatpush1.msra.mxu0 0.0
      %761 = vmatprep.subr.mxu0 0.0
      %762 = vmatpush1.msra.mxu0 0.0
      %763 = vmatprep.subr.mxu0 0.0
      %764 = vmatpush1.msra.mxu0 0.0
      %765 = vmatprep.subr.mxu0 0.0
      %766 = vmatpush1.msra.mxu0 0.0
      %767 = vmatprep.subr.mxu0 0.0
      %768 = vmatpush1.msra.mxu0 0.0
      %769 = vmatprep.subr.mxu0 0.0
      %770 = vmatpush1.msra.mxu0 0.0
      %771 = vmatprep.subr.mxu0 0.0
      %772 = vmatpush1.msra.mxu0 0.0
      %773 = vmatprep.subr.mxu0 0.0
      %774 = vmatpush1.msra.mxu0 0.0
      %775 = vmatprep.subr.mxu0 0.0
      %776 = vmatpush1.msra.mxu0 0.0
      %777 = vmatprep.subr.mxu0 0.0
      %778 = vmatpush1.msra.mxu0 0.0
      %779 = vmatprep.subr.mxu0 0.0
      %780 = vmatpush1.msra.mxu0 0.0
      %781 = vmatprep.subr.mxu0 0.0
      %782 = vmatpush1.msra.mxu0 0.0
      %783 = vmatprep.subr.mxu0 0.0
      %784 = vmatpush1.msra.mxu0 0.0
      %785 = vmatprep.subr.mxu0 0.0
      %786 = vmatpush1.msra.mxu0 0.0
      %787 = vmatprep.subr.mxu0 0.0
      %788 = vmatpush1.msra.mxu0 0.0
      %789 = vmatprep.subr.mxu0 0.0
      %790 = vmatpush1.msra.mxu0 0.0
      %791 = vmatprep.subr.mxu0 0.0
      %792 = vmatpush1.msra.mxu0 0.0
      %793 = vmatprep.subr.mxu0 0.0
      %794 = vmatpush1.msra.mxu0 0.0
      %795 = vmatprep.subr.mxu0 0.0
      %796 = vmatpush1.msra.mxu0 0.0
      %797 = vmatprep.subr.mxu0 0.0
      %798 = vmatpush1.msra.mxu0 0.0
      %799 = vmatprep.subr.mxu0 0.0
      %800 = vmatpush1.msra.mxu0 0.0
      %801 = vmatprep.subr.mxu0 0.0
      %802 = vmatpush1.msra.mxu0 0.0
      %803 = vmatprep.subr.mxu0 0.0
      %804 = vmatpush1.msra.mxu0 0.0
      %805 = vmatprep.subr.mxu0 0.0
      %806 = vmatpush1.msra.mxu0 0.0
      %807 = vmatprep.mubr.f32.mxu0 0.0
      %808 = vmatmul.mubr.f32.gmra.mrb[0].mxu0 %v735
      %v809 = vpop.f32.mrb[0].mxu0
      %v810 = vadd.f32 0.0, %v809
      %v811 = vpop.f32.mrb[0].mxu0
      %v812 = vadd.f32 0.0, %v811
      %813 = vdwg.mxu0
      %v814 = vadd.f32 %v708, %v810
      %v815 = vadd.f32 %v709, %v812
      %s816 = scalar_lea.vmem %s3, 16
      %v817 = vld [vmem:[%s816] sm:$0xf]
      %v819 = vsel %vm442, %v817, 0
      %v822 = vsel %vm446, %v392, 0
      %v825 = vsel %vm446, %v393, 0
      %827 = vmatprep.subr.mxu0 %v825
      %828 = vmatpush1.msra.mxu0 %v822
      %829 = vmatprep.subr.mxu0 0.0
      %830 = vmatpush1.msra.mxu0 0.0
      %831 = vmatprep.subr.mxu0 0.0
      %832 = vmatpush1.msra.mxu0 0.0
      %833 = vmatprep.subr.mxu0 0.0
      %834 = vmatpush1.msra.mxu0 0.0
      %835 = vmatprep.subr.mxu0 0.0
      %836 = vmatpush1.msra.mxu0 0.0
      %837 = vmatprep.subr.mxu0 0.0
      %838 = vmatpush1.msra.mxu0 0.0
      %839 = vmatprep.subr.mxu0 0.0
      %840 = vmatpush1.msra.mxu0 0.0
      %841 = vmatprep.subr.mxu0 0.0
      %842 = vmatpush1.msra.mxu0 0.0
      %843 = vmatprep.subr.mxu0 0.0
      %844 = vmatpush1.msra.mxu0 0.0
      %845 = vmatprep.subr.mxu0 0.0
      %846 = vmatpush1.msra.mxu0 0.0
      %847 = vmatprep.subr.mxu0 0.0
      %848 = vmatpush1.msra.mxu0 0.0
      %849 = vmatprep.subr.mxu0 0.0
      %850 = vmatpush1.msra.mxu0 0.0
      %851 = vmatprep.subr.mxu0 0.0
      %852 = vmatpush1.msra.mxu0 0.0
      %853 = vmatprep.subr.mxu0 0.0
      %854 = vmatpush1.msra.mxu0 0.0
      %855 = vmatprep.subr.mxu0 0.0
      %856 = vmatpush1.msra.mxu0 0.0
      %857 = vmatprep.subr.mxu0 0.0
      %858 = vmatpush1.msra.mxu0 0.0
      %859 = vmatprep.subr.mxu0 0.0
      %860 = vmatpush1.msra.mxu0 0.0
      %861 = vmatprep.subr.mxu0 0.0
      %862 = vmatpush1.msra.mxu0 0.0
      %863 = vmatprep.subr.mxu0 0.0
      %864 = vmatpush1.msra.mxu0 0.0
      %865 = vmatprep.subr.mxu0 0.0
      %866 = vmatpush1.msra.mxu0 0.0
      %867 = vmatprep.subr.mxu0 0.0
      %868 = vmatpush1.msra.mxu0 0.0
      %869 = vmatprep.subr.mxu0 0.0
      %870 = vmatpush1.msra.mxu0 0.0
      %871 = vmatprep.subr.mxu0 0.0
      %872 = vmatpush1.msra.mxu0 0.0
      %873 = vmatprep.subr.mxu0 0.0
      %874 = vmatpush1.msra.mxu0 0.0
      %875 = vmatprep.subr.mxu0 0.0
      %876 = vmatpush1.msra.mxu0 0.0
      %877 = vmatprep.subr.mxu0 0.0
      %878 = vmatpush1.msra.mxu0 0.0
      %879 = vmatprep.subr.mxu0 0.0
      %880 = vmatpush1.msra.mxu0 0.0
      %881 = vmatprep.subr.mxu0 0.0
      %882 = vmatpush1.msra.mxu0 0.0
      %883 = vmatprep.subr.mxu0 0.0
      %884 = vmatpush1.msra.mxu0 0.0
      %885 = vmatprep.subr.mxu0 0.0
      %886 = vmatpush1.msra.mxu0 0.0
      %887 = vmatprep.subr.mxu0 0.0
      %888 = vmatpush1.msra.mxu0 0.0
      %889 = vmatprep.subr.mxu0 0.0
      %890 = vmatpush1.msra.mxu0 0.0
      %891 = vmatprep.mubr.f32.mxu0 0.0
      %892 = vmatmul.mubr.f32.gmra.mrb[0].mxu0 %v819
      %v893 = vpop.f32.mrb[0].mxu0
      %v894 = vadd.f32 0.0, %v893
      %v895 = vpop.f32.mrb[0].mxu0
      %v896 = vadd.f32 0.0, %v895
      %897 = vdwg.mxu0
      %v898 = vadd.f32 %v814, %v894
      %v899 = vadd.f32 %v815, %v896
      %900 = vrot.lane.b32.xlu0 %v392, 127
      %v901 = vpop.permute.xlu0 %900
      %902 = vrot.lane.b32.xlu0 %v393, 127
      %v903 = vpop.permute.xlu0 %902
      %vm904 = vcmp.lt.s32.totalorder %v399, 127
      %v905 = vsel %vm904, %v901, %v903
      %v906 = vsel %vm904, %v903, %v901
      %s907 = scalar_lea.vmem %s7, 10
      %v908 = vld [vmem:[%s907] sm:$0x3]
      %v910 = vlaneseq
      %v911 = vshrl.u32 %v910, 7
      %v912 = vsub.s32 0, %v911
      %v913 = vrot.slane %v908, %v912
      %v914 = vlaneseq
      %v915 = vshrl.u32 %v914, 7
      %v916 = vsub.s32 1, %v915
      %v917 = vrot.slane %v908, %v916
      %v920 = vmul.f32 %v905, %v913
      %v921 = vmul.f32 %v906, %v917
      %s922 = scalar_lea.vmem %s3, 20
      %v923 = vld [vmem:[%s922] sm:$0xf]
      %v925 = vsel %vm442, %v923, 0
      %v928 = vsel %vm446, %v920, 0
      %v931 = vsel %vm446, %v921, 0
      %933 = vmatprep.subr.mxu0 %v931
      %934 = vmatpush1.msra.mxu0 %v928
      %935 = vmatprep.subr.mxu0 0.0
      %936 = vmatpush1.msra.mxu0 0.0
      %937 = vmatprep.subr.mxu0 0.0
      %938 = vmatpush1.msra.mxu0 0.0
      %939 = vmatprep.subr.mxu0 0.0
      %940 = vmatpush1.msra.mxu0 0.0
      %941 = vmatprep.subr.mxu0 0.0
      %942 = vmatpush1.msra.mxu0 0.0
      %943 = vmatprep.subr.mxu0 0.0
      %944 = vmatpush1.msra.mxu0 0.0
      %945 = vmatprep.subr.mxu0 0.0
      %946 = vmatpush1.msra.mxu0 0.0
      %947 = vmatprep.subr.mxu0 0.0
      %948 = vmatpush1.msra.mxu0 0.0
      %949 = vmatprep.subr.mxu0 0.0
      %950 = vmatpush1.msra.mxu0 0.0
      %951 = vmatprep.subr.mxu0 0.0
      %952 = vmatpush1.msra.mxu0 0.0
      %953 = vmatprep.subr.mxu0 0.0
      %954 = vmatpush1.msra.mxu0 0.0
      %955 = vmatprep.subr.mxu0 0.0
      %956 = vmatpush1.msra.mxu0 0.0
      %957 = vmatprep.subr.mxu0 0.0
      %958 = vmatpush1.msra.mxu0 0.0
      %959 = vmatprep.subr.mxu0 0.0
      %960 = vmatpush1.msra.mxu0 0.0
      %961 = vmatprep.subr.mxu0 0.0
      %962 = vmatpush1.msra.mxu0 0.0
      %963 = vmatprep.subr.mxu0 0.0
      %964 = vmatpush1.msra.mxu0 0.0
      %965 = vmatprep.subr.mxu0 0.0
      %966 = vmatpush1.msra.mxu0 0.0
      %967 = vmatprep.subr.mxu0 0.0
      %968 = vmatpush1.msra.mxu0 0.0
      %969 = vmatprep.subr.mxu0 0.0
      %970 = vmatpush1.msra.mxu0 0.0
      %971 = vmatprep.subr.mxu0 0.0
      %972 = vmatpush1.msra.mxu0 0.0
      %973 = vmatprep.subr.mxu0 0.0
      %974 = vmatpush1.msra.mxu0 0.0
      %975 = vmatprep.subr.mxu0 0.0
      %976 = vmatpush1.msra.mxu0 0.0
      %977 = vmatprep.subr.mxu0 0.0
      %978 = vmatpush1.msra.mxu0 0.0
      %979 = vmatprep.subr.mxu0 0.0
      %980 = vmatpush1.msra.mxu0 0.0
      %981 = vmatprep.subr.mxu0 0.0
      %982 = vmatpush1.msra.mxu0 0.0
      %983 = vmatprep.subr.mxu0 0.0
      %984 = vmatpush1.msra.mxu0 0.0
      %985 = vmatprep.subr.mxu0 0.0
      %986 = vmatpush1.msra.mxu0 0.0
      %987 = vmatprep.subr.mxu0 0.0
      %988 = vmatpush1.msra.mxu0 0.0
      %989 = vmatprep.subr.mxu0 0.0
      %990 = vmatpush1.msra.mxu0 0.0
      %991 = vmatprep.subr.mxu0 0.0
      %992 = vmatpush1.msra.mxu0 0.0
      %993 = vmatprep.subr.mxu0 0.0
      %994 = vmatpush1.msra.mxu0 0.0
      %995 = vmatprep.subr.mxu0 0.0
      %996 = vmatpush1.msra.mxu0 0.0
      %997 = vmatprep.mubr.f32.mxu0 0.0
      %998 = vmatmul.mubr.f32.gmra.mrb[0].mxu0 %v925
      %v999 = vpop.f32.mrb[0].mxu0
      %v1000 = vadd.f32 0.0, %v999
      %v1001 = vpop.f32.mrb[0].mxu0
      %v1002 = vadd.f32 0.0, %v1001
      %1003 = vdwg.mxu0
      %v1004 = vadd.f32 %v898, %v1000
      %v1005 = vadd.f32 %v899, %v1002
      %1006 = vrot.lane.b32.xlu0 %v392, 113
      %v1007 = vpop.permute.xlu0 %1006
      %1008 = vrot.lane.b32.xlu0 %v393, 113
      %v1009 = vpop.permute.xlu0 %1008
      %vm1010 = vcmp.lt.s32.totalorder %v399, 113
      %v1011 = vsel %vm1010, %v1007, %v1009
      %v1012 = vsel %vm1010, %v1009, %v1007
      %s1013 = scalar_lea.vmem %s7, 12
      %v1014 = vld [vmem:[%s1013] sm:$0x3]
      %v1016 = vlaneseq
      %v1017 = vshrl.u32 %v1016, 7
      %v1018 = vsub.s32 0, %v1017
      %v1019 = vrot.slane %v1014, %v1018
      %v1020 = vlaneseq
      %v1021 = vshrl.u32 %v1020, 7
      %v1022 = vsub.s32 1, %v1021
      %v1023 = vrot.slane %v1014, %v1022
      %v1026 = vmul.f32 %v1011, %v1019
      %v1027 = vmul.f32 %v1012, %v1023
      %s1028 = scalar_lea.vmem %s3, 24
      %v1029 = vld [vmem:[%s1028] sm:$0xf]
      %v1031 = vsel %vm442, %v1029, 0
      %v1034 = vsel %vm446, %v1026, 0
      %v1037 = vsel %vm446, %v1027, 0
      %1039 = vmatprep.subr.mxu0 %v1037
      %1040 = vmatpush1.msra.mxu0 %v1034
      %1041 = vmatprep.subr.mxu0 0.0
      %1042 = vmatpush1.msra.mxu0 0.0
      %1043 = vmatprep.subr.mxu0 0.0
      %1044 = vmatpush1.msra.mxu0 0.0
      %1045 = vmatprep.subr.mxu0 0.0
      %1046 = vmatpush1.msra.mxu0 0.0
      %1047 = vmatprep.subr.mxu0 0.0
      %1048 = vmatpush1.msra.mxu0 0.0
      %1049 = vmatprep.subr.mxu0 0.0
      %1050 = vmatpush1.msra.mxu0 0.0
      %1051 = vmatprep.subr.mxu0 0.0
      %1052 = vmatpush1.msra.mxu0 0.0
      %1053 = vmatprep.subr.mxu0 0.0
      %1054 = vmatpush1.msra.mxu0 0.0
      %1055 = vmatprep.subr.mxu0 0.0
      %1056 = vmatpush1.msra.mxu0 0.0
      %1057 = vmatprep.subr.mxu0 0.0
      %1058 = vmatpush1.msra.mxu0 0.0
      %1059 = vmatprep.subr.mxu0 0.0
      %1060 = vmatpush1.msra.mxu0 0.0
      %1061 = vmatprep.subr.mxu0 0.0
      %1062 = vmatpush1.msra.mxu0 0.0
      %1063 = vmatprep.subr.mxu0 0.0
      %1064 = vmatpush1.msra.mxu0 0.0
      %1065 = vmatprep.subr.mxu0 0.0
      %1066 = vmatpush1.msra.mxu0 0.0
      %1067 = vmatprep.subr.mxu0 0.0
      %1068 = vmatpush1.msra.mxu0 0.0
      %1069 = vmatprep.subr.mxu0 0.0
      %1070 = vmatpush1.msra.mxu0 0.0
      %1071 = vmatprep.subr.mxu0 0.0
      %1072 = vmatpush1.msra.mxu0 0.0
      %1073 = vmatprep.subr.mxu0 0.0
      %1074 = vmatpush1.msra.mxu0 0.0
      %1075 = vmatprep.subr.mxu0 0.0
      %1076 = vmatpush1.msra.mxu0 0.0
      %1077 = vmatprep.subr.mxu0 0.0
      %1078 = vmatpush1.msra.mxu0 0.0
      %1079 = vmatprep.subr.mxu0 0.0
      %1080 = vmatpush1.msra.mxu0 0.0
      %1081 = vmatprep.subr.mxu0 0.0
      %1082 = vmatpush1.msra.mxu0 0.0
      %1083 = vmatprep.subr.mxu0 0.0
      %1084 = vmatpush1.msra.mxu0 0.0
      %1085 = vmatprep.subr.mxu0 0.0
      %1086 = vmatpush1.msra.mxu0 0.0
      %1087 = vmatprep.subr.mxu0 0.0
      %1088 = vmatpush1.msra.mxu0 0.0
      %1089 = vmatprep.subr.mxu0 0.0
      %1090 = vmatpush1.msra.mxu0 0.0
      %1091 = vmatprep.subr.mxu0 0.0
      %1092 = vmatpush1.msra.mxu0 0.0
      %1093 = vmatprep.subr.mxu0 0.0
      %1094 = vmatpush1.msra.mxu0 0.0
      %1095 = vmatprep.subr.mxu0 0.0
      %1096 = vmatpush1.msra.mxu0 0.0
      %1097 = vmatprep.subr.mxu0 0.0
      %1098 = vmatpush1.msra.mxu0 0.0
      %1099 = vmatprep.subr.mxu0 0.0
      %1100 = vmatpush1.msra.mxu0 0.0
      %1101 = vmatprep.subr.mxu0 0.0
      %1102 = vmatpush1.msra.mxu0 0.0
      %1103 = vmatprep.mubr.f32.mxu0 0.0
      %1104 = vmatmul.mubr.f32.gmra.mrb[0].mxu0 %v1031
      %v1105 = vpop.f32.mrb[0].mxu0
      %v1106 = vadd.f32 0.0, %v1105
      %v1107 = vpop.f32.mrb[0].mxu0
      %v1108 = vadd.f32 0.0, %v1107
      %1109 = vdwg.mxu0
      %v1110 = vadd.f32 %v1004, %v1106
      %v1111 = vadd.f32 %v1005, %v1108
      %1112 = vrot.lane.b32.xlu0 %v392, 112
      %v1113 = vpop.permute.xlu0 %1112
      %1114 = vrot.lane.b32.xlu0 %v393, 112
      %v1115 = vpop.permute.xlu0 %1114
      %vm1116 = vcmp.lt.s32.totalorder %v399, 112
      %v1117 = vsel %vm1116, %v1113, %v1115
      %v1118 = vsel %vm1116, %v1115, %v1113
      %s1119 = scalar_lea.vmem %s7, 14
      %v1120 = vld [vmem:[%s1119] sm:$0x3]
      %v1122 = vlaneseq
      %v1123 = vshrl.u32 %v1122, 7
      %v1124 = vsub.s32 0, %v1123
      %v1125 = vrot.slane %v1120, %v1124
      %v1126 = vlaneseq
      %v1127 = vshrl.u32 %v1126, 7
      %v1128 = vsub.s32 1, %v1127
      %v1129 = vrot.slane %v1120, %v1128
      %v1132 = vmul.f32 %v1117, %v1125
      %v1133 = vmul.f32 %v1118, %v1129
      %s1134 = scalar_lea.vmem %s3, 28
      %v1135 = vld [vmem:[%s1134] sm:$0xf]
      %v1137 = vsel %vm442, %v1135, 0
      %v1140 = vsel %vm446, %v1132, 0
      %v1143 = vsel %vm446, %v1133, 0
      %1145 = vmatprep.subr.mxu0 %v1143
      %1146 = vmatpush1.msra.mxu0 %v1140
      %1147 = vmatprep.subr.mxu0 0.0
      %1148 = vmatpush1.msra.mxu0 0.0
      %1149 = vmatprep.subr.mxu0 0.0
      %1150 = vmatpush1.msra.mxu0 0.0
      %1151 = vmatprep.subr.mxu0 0.0
      %1152 = vmatpush1.msra.mxu0 0.0
      %1153 = vmatprep.subr.mxu0 0.0
      %1154 = vmatpush1.msra.mxu0 0.0
      %1155 = vmatprep.subr.mxu0 0.0
      %1156 = vmatpush1.msra.mxu0 0.0
      %1157 = vmatprep.subr.mxu0 0.0
      %1158 = vmatpush1.msra.mxu0 0.0
      %1159 = vmatprep.subr.mxu0 0.0
      %1160 = vmatpush1.msra.mxu0 0.0
      %1161 = vmatprep.subr.mxu0 0.0
      %1162 = vmatpush1.msra.mxu0 0.0
      %1163 = vmatprep.subr.mxu0 0.0
      %1164 = vmatpush1.msra.mxu0 0.0
      %1165 = vmatprep.subr.mxu0 0.0
      %1166 = vmatpush1.msra.mxu0 0.0
      %1167 = vmatprep.subr.mxu0 0.0
      %1168 = vmatpush1.msra.mxu0 0.0
      %1169 = vmatprep.subr.mxu0 0.0
      %1170 = vmatpush1.msra.mxu0 0.0
      %1171 = vmatprep.subr.mxu0 0.0
      %1172 = vmatpush1.msra.mxu0 0.0
      %1173 = vmatprep.subr.mxu0 0.0
      %1174 = vmatpush1.msra.mxu0 0.0
      %1175 = vmatprep.subr.mxu0 0.0
      %1176 = vmatpush1.msra.mxu0 0.0
      %1177 = vmatprep.subr.mxu0 0.0
      %1178 = vmatpush1.msra.mxu0 0.0
      %1179 = vmatprep.subr.mxu0 0.0
      %1180 = vmatpush1.msra.mxu0 0.0
      %1181 = vmatprep.subr.mxu0 0.0
      %1182 = vmatpush1.msra.mxu0 0.0
      %1183 = vmatprep.subr.mxu0 0.0
      %1184 = vmatpush1.msra.mxu0 0.0
      %1185 = vmatprep.subr.mxu0 0.0
      %1186 = vmatpush1.msra.mxu0 0.0
      %1187 = vmatprep.subr.mxu0 0.0
      %1188 = vmatpush1.msra.mxu0 0.0
      %1189 = vmatprep.subr.mxu0 0.0
      %1190 = vmatpush1.msra.mxu0 0.0
      %1191 = vmatprep.subr.mxu0 0.0
      %1192 = vmatpush1.msra.mxu0 0.0
      %1193 = vmatprep.subr.mxu0 0.0
      %1194 = vmatpush1.msra.mxu0 0.0
      %1195 = vmatprep.subr.mxu0 0.0
      %1196 = vmatpush1.msra.mxu0 0.0
      %1197 = vmatprep.subr.mxu0 0.0
      %1198 = vmatpush1.msra.mxu0 0.0
      %1199 = vmatprep.subr.mxu0 0.0
      %1200 = vmatpush1.msra.mxu0 0.0
      %1201 = vmatprep.subr.mxu0 0.0
      %1202 = vmatpush1.msra.mxu0 0.0
      %1203 = vmatprep.subr.mxu0 0.0
      %1204 = vmatpush1.msra.mxu0 0.0
      %1205 = vmatprep.subr.mxu0 0.0
      %1206 = vmatpush1.msra.mxu0 0.0
      %1207 = vmatprep.subr.mxu0 0.0
      %1208 = vmatpush1.msra.mxu0 0.0
      %1209 = vmatprep.mubr.f32.mxu0 0.0
      %1210 = vmatmul.mubr.f32.gmra.mrb[0].mxu0 %v1137
      %v1211 = vpop.f32.mrb[0].mxu0
      %v1212 = vadd.f32 0.0, %v1211
      %v1213 = vpop.f32.mrb[0].mxu0
      %v1214 = vadd.f32 0.0, %v1213
      %1215 = vdwg.mxu0
      %v1216 = vadd.f32 %v1110, %v1212
      %v1217 = vadd.f32 %v1111, %v1214
      %1218 = vrot.lane.b32.xlu0 %v392, 111
      %v1219 = vpop.permute.xlu0 %1218
      %1220 = vrot.lane.b32.xlu0 %v393, 111
      %v1221 = vpop.permute.xlu0 %1220
      %vm1222 = vcmp.lt.s32.totalorder %v399, 111
      %v1223 = vsel %vm1222, %v1219, %v1221
      %v1224 = vsel %vm1222, %v1221, %v1219
      %s1225 = scalar_lea.vmem %s7, 16
      %v1226 = vld [vmem:[%s1225] sm:$0x3]
      %v1228 = vlaneseq
      %v1229 = vshrl.u32 %v1228, 7
      %v1230 = vsub.s32 0, %v1229
      %v1231 = vrot.slane %v1226, %v1230
      %v1232 = vlaneseq
      %v1233 = vshrl.u32 %v1232, 7
      %v1234 = vsub.s32 1, %v1233
      %v1235 = vrot.slane %v1226, %v1234
      %v1238 = vmul.f32 %v1223, %v1231
      %v1239 = vmul.f32 %v1224, %v1235
      %s1240 = scalar_lea.vmem %s3, 32
      %v1241 = vld [vmem:[%s1240] sm:$0xf]
      %v1243 = vsel %vm442, %v1241, 0
      %v1246 = vsel %vm446, %v1238, 0
      %v1249 = vsel %vm446, %v1239, 0
      %1251 = vmatprep.subr.mxu0 %v1249
      %1252 = vmatpush1.msra.mxu0 %v1246
      %1253 = vmatprep.subr.mxu0 0.0
      %1254 = vmatpush1.msra.mxu0 0.0
      %1255 = vmatprep.subr.mxu0 0.0
      %1256 = vmatpush1.msra.mxu0 0.0
      %1257 = vmatprep.subr.mxu0 0.0
      %1258 = vmatpush1.msra.mxu0 0.0
      %1259 = vmatprep.subr.mxu0 0.0
      %1260 = vmatpush1.msra.mxu0 0.0
      %1261 = vmatprep.subr.mxu0 0.0
      %1262 = vmatpush1.msra.mxu0 0.0
      %1263 = vmatprep.subr.mxu0 0.0
      %1264 = vmatpush1.msra.mxu0 0.0
      %1265 = vmatprep.subr.mxu0 0.0
      %1266 = vmatpush1.msra.mxu0 0.0
      %1267 = vmatprep.subr.mxu0 0.0
      %1268 = vmatpush1.msra.mxu0 0.0
      %1269 = vmatprep.subr.mxu0 0.0
      %1270 = vmatpush1.msra.mxu0 0.0
      %1271 = vmatprep.subr.mxu0 0.0
      %1272 = vmatpush1.msra.mxu0 0.0
      %1273 = vmatprep.subr.mxu0 0.0
      %1274 = vmatpush1.msra.mxu0 0.0
      %1275 = vmatprep.subr.mxu0 0.0
      %1276 = vmatpush1.msra.mxu0 0.0
      %1277 = vmatprep.subr.mxu0 0.0
      %1278 = vmatpush1.msra.mxu0 0.0
      %1279 = vmatprep.subr.mxu0 0.0
      %1280 = vmatpush1.msra.mxu0 0.0
      %1281 = vmatprep.subr.mxu0 0.0
      %1282 = vmatpush1.msra.mxu0 0.0
      %1283 = vmatprep.subr.mxu0 0.0
      %1284 = vmatpush1.msra.mxu0 0.0
      %1285 = vmatprep.subr.mxu0 0.0
      %1286 = vmatpush1.msra.mxu0 0.0
      %1287 = vmatprep.subr.mxu0 0.0
      %1288 = vmatpush1.msra.mxu0 0.0
      %1289 = vmatprep.subr.mxu0 0.0
      %1290 = vmatpush1.msra.mxu0 0.0
      %1291 = vmatprep.subr.mxu0 0.0
      %1292 = vmatpush1.msra.mxu0 0.0
      %1293 = vmatprep.subr.mxu0 0.0
      %1294 = vmatpush1.msra.mxu0 0.0
      %1295 = vmatprep.subr.mxu0 0.0
      %1296 = vmatpush1.msra.mxu0 0.0
      %1297 = vmatprep.subr.mxu0 0.0
      %1298 = vmatpush1.msra.mxu0 0.0
      %1299 = vmatprep.subr.mxu0 0.0
      %1300 = vmatpush1.msra.mxu0 0.0
      %1301 = vmatprep.subr.mxu0 0.0
      %1302 = vmatpush1.msra.mxu0 0.0
      %1303 = vmatprep.subr.mxu0 0.0
      %1304 = vmatpush1.msra.mxu0 0.0
      %1305 = vmatprep.subr.mxu0 0.0
      %1306 = vmatpush1.msra.mxu0 0.0
      %1307 = vmatprep.subr.mxu0 0.0
      %1308 = vmatpush1.msra.mxu0 0.0
      %1309 = vmatprep.subr.mxu0 0.0
      %1310 = vmatpush1.msra.mxu0 0.0
      %1311 = vmatprep.subr.mxu0 0.0
      %1312 = vmatpush1.msra.mxu0 0.0
      %1313 = vmatprep.subr.mxu0 0.0
      %1314 = vmatpush1.msra.mxu0 0.0
      %1315 = vmatprep.mubr.f32.mxu0 0.0
      %1316 = vmatmul.mubr.f32.gmra.mrb[0].mxu0 %v1243
      %v1317 = vpop.f32.mrb[0].mxu0
      %v1318 = vadd.f32 0.0, %v1317
      %v1319 = vpop.f32.mrb[0].mxu0
      %v1320 = vadd.f32 0.0, %v1319
      %1321 = vdwg.mxu0
      %v1322 = vadd.f32 %v1216, %v1318
      %v1323 = vadd.f32 %v1217, %v1320
      %v1324 = vld [vmem:[%s4] sm:$0xf]
      %1326 = vset.pattern.permute.xlu0 0
      %1327 = vperm.xlu0 %1326, %v1324
      %v1328 = vpop.permute.xlu0 %1327
      %v1330 = vadd.f32 %v1322, %v1328
      %v1331 = vadd.f32 %v1323, %v1328
      %v1332 = vmax.f32 %v1330, 0.0
      %v1333 = vmax.f32 %v1331, 0.0
      %v1334 = vld [vmem:[%s5] sm:$0xff]
      %v1335 = vld [vmem:[%s5 + $0x8] sm:$0xff]
      %v1336 = vld [vmem:[%s6] sm:$0xff]
      %v1337 = vld [vmem:[%s6 + $0x8] sm:$0xff]
      %1339 = vset.pattern.permute.xlu0 0
      %1340 = vperm.xlu0 %1339, %v1336
      %v1341 = vpop.permute.xlu0 %1340
      %1344 = vset.pattern.permute.xlu0 0
      %1345 = vperm.xlu0 %1344, %v1337
      %v1346 = vpop.permute.xlu0 %1345
      %v1349 = vsel %vm442, %v1334, 0
      %v1352 = vsel %vm442, %v1335, 0
      %v1355 = vsel %vm446, %v1332, 0
      %v1358 = vsel %vm446, %v1333, 0
      %1360 = vmatprep.subr.mxu0 %v1358
      %1361 = vmatpush1.msra.mxu0 %v1355
      %1362 = vmatprep.subr.mxu0 0.0
      %1363 = vmatpush1.msra.mxu0 0.0
      %1364 = vmatprep.subr.mxu0 0.0
      %1365 = vmatpush1.msra.mxu0 0.0
      %1366 = vmatprep.subr.mxu0 0.0
      %1367 = vmatpush1.msra.mxu0 0.0
      %1368 = vmatprep.subr.mxu0 0.0
      %1369 = vmatpush1.msra.mxu0 0.0
      %1370 = vmatprep.subr.mxu0 0.0
      %1371 = vmatpush1.msra.mxu0 0.0
      %1372 = vmatprep.subr.mxu0 0.0
      %1373 = vmatpush1.msra.mxu0 0.0
      %1374 = vmatprep.subr.mxu0 0.0
      %1375 = vmatpush1.msra.mxu0 0.0
      %1376 = vmatprep.subr.mxu0 0.0
      %1377 = vmatpush1.msra.mxu0 0.0
      %1378 = vmatprep.subr.mxu0 0.0
      %1379 = vmatpush1.msra.mxu0 0.0
      %1380 = vmatprep.subr.mxu0 0.0
      %1381 = vmatpush1.msra.mxu0 0.0
      %1382 = vmatprep.subr.mxu0 0.0
      %1383 = vmatpush1.msra.mxu0 0.0
      %1384 = vmatprep.subr.mxu0 0.0
      %1385 = vmatpush1.msra.mxu0 0.0
      %1386 = vmatprep.subr.mxu0 0.0
      %1387 = vmatpush1.msra.mxu0 0.0
      %1388 = vmatprep.subr.mxu0 0.0
      %1389 = vmatpush1.msra.mxu0 0.0
      %1390 = vmatprep.subr.mxu0 0.0
      %1391 = vmatpush1.msra.mxu0 0.0
      %1392 = vmatprep.subr.mxu0 0.0
      %1393 = vmatpush1.msra.mxu0 0.0
      %1394 = vmatprep.subr.mxu0 0.0
      %1395 = vmatpush1.msra.mxu0 0.0
      %1396 = vmatprep.subr.mxu0 0.0
      %1397 = vmatpush1.msra.mxu0 0.0
      %1398 = vmatprep.subr.mxu0 0.0
      %1399 = vmatpush1.msra.mxu0 0.0
      %1400 = vmatprep.subr.mxu0 0.0
      %1401 = vmatpush1.msra.mxu0 0.0
      %1402 = vmatprep.subr.mxu0 0.0
      %1403 = vmatpush1.msra.mxu0 0.0
      %1404 = vmatprep.subr.mxu0 0.0
      %1405 = vmatpush1.msra.mxu0 0.0
      %1406 = vmatprep.subr.mxu0 0.0
      %1407 = vmatpush1.msra.mxu0 0.0
      %1408 = vmatprep.subr.mxu0 0.0
      %1409 = vmatpush1.msra.mxu0 0.0
      %1410 = vmatprep.subr.mxu0 0.0
      %1411 = vmatpush1.msra.mxu0 0.0
      %1412 = vmatprep.subr.mxu0 0.0
      %1413 = vmatpush1.msra.mxu0 0.0
      %1414 = vmatprep.subr.mxu0 0.0
      %1415 = vmatpush1.msra.mxu0 0.0
      %1416 = vmatprep.subr.mxu0 0.0
      %1417 = vmatpush1.msra.mxu0 0.0
      %1418 = vmatprep.subr.mxu0 0.0
      %1419 = vmatpush1.msra.mxu0 0.0
      %1420 = vmatprep.subr.mxu0 0.0
      %1421 = vmatpush1.msra.mxu0 0.0
      %1422 = vmatprep.subr.mxu0 0.0
      %1423 = vmatpush1.msra.mxu0 0.0
      %1424 = vmatprep.mubr.f32.mxu0 0.0
      %1425 = vmatmul.mubr.f32.gmra.mrb[0].mxu0 %v1349
      %v1426 = vpop.f32.mrb[0].mxu0
      %v1427 = vadd.f32 %v1341, %v1426
      %v1428 = vpop.f32.mrb[0].mxu0
      %v1429 = vadd.f32 %v1341, %v1428
      %1430 = vmatprep.mubr.f32.mxu0 0.0
      %1431 = vmatmul.mubr.f32.gmra.mrb[0].mxu0 %v1352
      %v1432 = vpop.f32.mrb[0].mxu0
      %v1433 = vadd.f32 %v1346, %v1432
      %v1434 = vpop.f32.mrb[0].mxu0
      %v1435 = vadd.f32 %v1346, %v1434
      %1436 = vdwg.mxu0
      %v1437 = vadd.f32 %v1427, %v306
      %v1438 = vadd.f32 %v1429, %v307
      %v1439 = vadd.f32 %v1433, %v308
      %v1440 = vadd.f32 %v1435, %v309
      %v1441 = vmax.f32 %v1437, 0.0
      %v1442 = vmax.f32 %v1438, 0.0
      %v1443 = vmax.f32 %v1439, 0.0
      %v1444 = vmax.f32 %v1440, 0.0
      %1445 = vst [vmem:[%s305] sm:$0xff] %v1441
      %1446 = vst [vmem:[%s305 + $0x8] sm:$0xff] %v1442
      %1447 = vst [vmem:[%s305 + $0x10] sm:$0xff] %v1443
      %1448 = vst [vmem:[%s305 + $0x18] sm:$0xff] %v1444
      %p1449 = scmp.lt.s32.totalorder %s19, 1
      %s1450 = scalar_select %p1449, %s19, 1
      %s1451 = smul.addr %s1450, 4
      %s1452 = smul.addr %s1451, 8
      %s1453 = scalar_lea.vmem %s8, %s1452
      // Predicated region
      $region53: #{bottleneck_forward.1} parent=51 // pred_check
        %p1454 = pneg %p210
      $region54: #{bottleneck_forward.1} parent=51 // pred_check_branch
        %1456 = sbr.rel (%p1454) target = $region56
      $region55: #{bottleneck_forward.1} parent=51 // pred_region
        _
      $region56: #{bottleneck_forward.1} parent=51 // pred_fallthru
        _
    $region52: #{bottleneck_forward.1} parent=5 // pred_fallthru
      _
    %p1457 = scmp.le.s32.totalorder 2, %s14
    // Predicated region
    $region57: #{bottleneck_forward.1} parent=5 // pred_check
      %p1458 = pneg %p1457
    $region58: #{bottleneck_forward.1} parent=5 // pred_check_branch
      %1460 = sbr.rel (%p1458) target = $region60
    $region59: #{bottleneck_forward.1} parent=5 // pred_region
      %s1461 = ssub.s32 %s14, 2
      // Predicated region
      $region61: #{bottleneck_forward.1} parent=59 // pred_check
        %p1462 = pneg %p216
      $region62: #{bottleneck_forward.1} parent=59 // pred_check_branch
        %1464 = sbr.rel (%p1462) target = $region64
      $region63: #{bottleneck_forward.1} parent=59 // pred_region
        %p1465 = scmp.lt.s32.totalorder %s20, 1
        %s1466 = scalar_select %p1465, %s20, 1
        %s1467 = smul.addr %s1466, 4
        %s1468 = smul.addr %s1467, 8
        %s1469 = scalar_lea.vmem %s8, %s1468
      $region64: #{bottleneck_forward.1} parent=59 // pred_fallthru
        _
    $region60: #{bottleneck_forward.1} parent=5 // pred_fallthru
      _
  $region6: #{bottleneck_forward.1} parent=0 // loop_footer
    %s18 = sadd.s32 1, %s14
  $region7: #{bottleneck_forward.1} parent=0 // loop_footer_branch
    %13 = sbr.rel target = $region3
  $region8: #{bottleneck_forward.1} parent=0 // loop_exit
    _

</llo_original>
